<compile_context>
chip_gen: v7x
topology: tpu7x:2x2x1
jax: 0.10.0
libtpu: 0.0.40
codegen_flags: <defaults>
</compile_context>

<pallas_src>
import functools

import jax
import jax.numpy as jnp
from jax.experimental import pallas as pl
from jax.experimental.pallas import tpu as pltpu


def lstm_kernel(x_ref, wih_ref, whh_ref, b_ref, wfc_ref, bfc_ref,
                out_ref, h_ref, c_ref, gx_ref,
                *, t_chunk, seq_len, mask_tail, unroll):
    """One (batch-tile, time-chunk) grid step.

    x_ref   : (T_CHUNK*B_tile, I)     time-major rows for this chunk/tile
    wih_ref : (I, 4*H_pad)            W_ih^T   (per-gate zero-padded H)
    whh_ref : (H_pad, 4*H_pad)        W_hh^T
    b_ref   : (1, 4*H_pad)            b_ih + b_hh (f32)
    wfc_ref : (H_pad, O_pad)          W_fc^T, lane-padded output
    bfc_ref : (1, O_pad)
    out_ref : (B_tile, O_pad)         written only on the last time chunk
    h_ref   : (B_tile, H_pad) f32     hidden state carried across chunks
    c_ref   : (B_tile, H_pad) f32     cell   state carried across chunks
    gx_ref  : (T_CHUNK*B_tile, 4*H_pad)  hoisted input projection (compute dtype)
    """
    B = out_ref.shape[0]          # batch tile (sublane-aligned)
    H = whh_ref.shape[0]          # padded hidden size (multiple of 128)
    t_idx = pl.program_id(1)

    # Reset the carried state at the start of each batch tile's time sweep.
    @pl.when(t_idx == 0)
    def _():
        h_ref[...] = jnp.zeros_like(h_ref)
        c_ref[...] = jnp.zeros_like(c_ref)

    # ---- Chunk prologue: input projection for all steps of this chunk in one
    # MXU matmul, bias folded in (no recurrent dependency).
    x = x_ref[...].astype(wih_ref.dtype)
    gx_ref[...] = (
        jnp.dot(x, wih_ref[...], preferred_element_type=jnp.float32)
        + b_ref[...]
    ).astype(gx_ref.dtype)

    # ---- Recurrence: only h @ W_hh^T + gate math per step. h/c are carried
    # as f32 values (vreg-resident within the loop). PyTorch gate order is
    # i, f, g, o; H is a multiple of 128 so the per-gate lane slices are free
    # full-vreg views.
    def step(tt, carry):
        h, c = carry
        row = pl.multiple_of(tt * B, B)               # sublane-aligned start
        gates = gx_ref[pl.ds(row, B), :].astype(jnp.float32) + jnp.dot(
            h.astype(whh_ref.dtype), whh_ref[...],
            preferred_element_type=jnp.float32)
        i_g = jax.nn.sigmoid(gates[:, 0 * H:1 * H])
        f_g = jax.nn.sigmoid(gates[:, 1 * H:2 * H])
        g_g = jnp.tanh(gates[:, 2 * H:3 * H])
        o_g = jax.nn.sigmoid(gates[:, 3 * H:4 * H])
        c_new = f_g * c + i_g * g_g
        h_new = o_g * jnp.tanh(c_new)
        if mask_tail:
            # Only taken when T % T_CHUNK != 0 (static): freeze state on the
            # zero-padded tail steps of the last chunk.
            valid = (t_idx * t_chunk + tt) < seq_len
            h_new = jnp.where(valid, h_new, h)
            c_new = jnp.where(valid, c_new, c)
        return h_new, c_new

    h, c = jax.lax.fori_loop(0, t_chunk, step, (h_ref[...], c_ref[...]),
                             unroll=unroll)
    h_ref[...] = h
    c_ref[...] = c

    # ---- Final FC on the last hidden state; lane-dense (padded-O) store.
    @pl.when(t_idx == pl.num_programs(1) - 1)
    def _():
        out_ref[...] = (
            jnp.dot(h.astype(wfc_ref.dtype), wfc_ref[...],
                    preferred_element_type=jnp.float32)
            + bfc_ref[...]
        ).astype(out_ref.dtype)


@functools.partial(
    jax.jit, static_argnames=("t_chunk", "num_batch_tiles", "compute_dtype"))
def lstm_forward(x, w_ih, w_hh, b_ih, b_hh, w_fc, b_fc, *,
                 t_chunk=None, num_batch_tiles=1,
                 compute_dtype=jnp.float32):
    T, B, I = x.shape
    H = w_hh.shape[1]
    O = w_fc.shape[0]

    SUBLANE, LANE = 8, 128
    H_pad = pl.cdiv(H, LANE) * LANE            # lane-aligned per-gate slices
    O_pad = pl.cdiv(O, LANE) * LANE            # lane-dense output store
    b_quant = SUBLANE * num_batch_tiles
    B_pad = pl.cdiv(B, b_quant) * b_quant
    B_tile = B_pad // num_batch_tiles          # per-TensorCore batch tile

    if t_chunk is None:
        t_chunk = min(T, 32)
    t_chunk = max(1, min(t_chunk, T))
    n_chunks = pl.cdiv(T, t_chunk)
    T_pad = n_chunks * t_chunk
    mask_tail = (T_pad != T)

    # ---- Layout plumbing (XLA-land). x is only padded when needed; the
    # reshape/transpose below is free for num_batch_tiles == 1.
    x_p = x
    if (T_pad, B_pad) != (T, B):
        x_p = jnp.pad(x, ((0, T_pad - T), (0, B_pad - B), (0, 0)))
    x_p = x_p.reshape(T_pad, num_batch_tiles, B_tile, I)
    x_p = jnp.transpose(x_p, (1, 0, 2, 3)).reshape(
        num_batch_tiles, T_pad * B_tile, I)

    def pad_gates(w):
        # (4H, ...) stacked [i, f, g, o] -> (4*H_pad, ...); each gate's H rows
        # zero-padded to H_pad so per-gate lane slices are full-vreg views.
        # (Padded lanes stay inert: zero weights/bias keep padded h/c at 0.)
        w4 = w.reshape(4, H, *w.shape[1:])
        cfg = [(0, 0), (0, H_pad - H)] + [(0, 0)] * (w.ndim - 1)
        return jnp.pad(w4, cfg).reshape(4 * H_pad, *w.shape[1:])

    w_ih_t = pad_gates(w_ih).T.astype(compute_dtype)                 # (I, 4H_pad)
    w_hh_t = jnp.pad(pad_gates(w_hh),
                     ((0, 0), (0, H_pad - H))).T.astype(compute_dtype)  # (H_pad, 4H_pad)
    bias = jnp.pad((b_ih + b_hh).reshape(4, H),
                   ((0, 0), (0, H_pad - H))).reshape(1, 4 * H_pad)
    bias = bias.astype(jnp.float32)
    w_fc_t = jnp.pad(w_fc.T, ((0, H_pad - H),
                              (0, O_pad - O))).astype(compute_dtype)    # (H_pad, O_pad)
    b_fc_p = jnp.pad(b_fc, (0, O_pad - O)).reshape(1, O_pad).astype(jnp.float32)

    # ---- Explicit VMEM budget (v5e scoped default is 16 MiB; v7x is 64 MiB
    # physical): 2x double-buffered blocks + gx + resident weights + headroom.
    c_item = jnp.dtype(compute_dtype).itemsize
    x_bytes = t_chunk * B_tile * I * x.dtype.itemsize
    gx_bytes = t_chunk * B_tile * 4 * H_pad * c_item
    w_bytes = (I * 4 * H_pad + H_pad * 4 * H_pad + H_pad * O_pad) * c_item
    misc_bytes = ((4 * H_pad + O_pad) * 4
                  + 2 * B_tile * H_pad * 4
                  + B_tile * O_pad * x.dtype.itemsize)
    vmem_est = 2 * x_bytes + gx_bytes + 2 * w_bytes + 2 * misc_bytes
    vmem_limit = int(min(max(2 * vmem_est, 8 << 20), 48 << 20))

    kernel = functools.partial(
        lstm_kernel, t_chunk=t_chunk, seq_len=T, mask_tail=mask_tail,
        unroll=min(8, t_chunk))

    out = pl.pallas_call(
        kernel,
        out_shape=jax.ShapeDtypeStruct((B_pad, O_pad), x.dtype),
        grid_spec=pltpu.PrefetchScalarGridSpec(
            num_scalar_prefetch=0,
            # (parallel batch tiles, sequential time chunks)
            grid=(num_batch_tiles, n_chunks),
            in_specs=[
                pl.BlockSpec((None, t_chunk * B_tile, I),
                             lambda b, t: (b, t, 0)),                 # x chunk
                pl.BlockSpec((I, 4 * H_pad), lambda b, t: (0, 0)),    # W_ih^T
                pl.BlockSpec((H_pad, 4 * H_pad), lambda b, t: (0, 0)),  # W_hh^T
                pl.BlockSpec((1, 4 * H_pad), lambda b, t: (0, 0)),    # bias
                pl.BlockSpec((H_pad, O_pad), lambda b, t: (0, 0)),    # W_fc^T
                pl.BlockSpec((1, O_pad), lambda b, t: (0, 0)),        # b_fc
            ],
            out_specs=pl.BlockSpec((B_tile, O_pad), lambda b, t: (b, 0)),
            scratch_shapes=[
                pltpu.VMEM((B_tile, H_pad), jnp.float32),             # h carry
                pltpu.VMEM((B_tile, H_pad), jnp.float32),             # c carry
                pltpu.VMEM((t_chunk * B_tile, 4 * H_pad), compute_dtype),  # gx
            ],
        ),
        compiler_params=pltpu.CompilerParams(
            dimension_semantics=("parallel", "arbitrary"),
            vmem_limit_bytes=vmem_limit),
    )(x_p, w_ih_t, w_hh_t, bias, w_fc_t, b_fc_p)

    return out[:B, :O]


def lstm_reference(x, w_ih, w_hh, b_ih, b_hh, w_fc, b_fc):
    """Pure-JAX reference matching torch.nn.LSTM + Linear semantics."""
    T, B, I = x.shape
    H = w_hh.shape[1]

    def step(carry, x_t):
        h, c = carry
        gates = x_t @ w_ih.T + b_ih + h @ w_hh.T + b_hh
        i_g = jax.nn.sigmoid(gates[:, 0 * H:1 * H])
        f_g = jax.nn.sigmoid(gates[:, 1 * H:2 * H])
        g_g = jnp.tanh(gates[:, 2 * H:3 * H])
        o_g = jax.nn.sigmoid(gates[:, 3 * H:4 * H])
        c_new = f_g * c + i_g * g_g
        h_new = o_g * jnp.tanh(c_new)
        return (h_new, c_new), None

    h0 = jnp.zeros((B, H), x.dtype)
    c0 = jnp.zeros((B, H), x.dtype)
    (h_last, _), _ = jax.lax.scan(step, (h0, c0), x)
    return h_last @ w_fc.T + b_fc


if __name__ == "__main__":
    # Small shapes implied by the module: x is (seq, batch, input_size).
    T, B, I, H, O = 8, 4, 16, 32, 8

    key = jax.random.PRNGKey(0)
    ks = jax.random.split(key, 7)
    s_lstm = 1.0 / jnp.sqrt(H)
    s_fc = 1.0 / jnp.sqrt(H)

    x = jax.random.normal(ks[0], (T, B, I), jnp.float32)
    w_ih = jax.random.uniform(ks[1], (4 * H, I), jnp.float32, -s_lstm, s_lstm)
    w_hh = jax.random.uniform(ks[2], (4 * H, H), jnp.float32, -s_lstm, s_lstm)
    b_ih = jax.random.uniform(ks[3], (4 * H,), jnp.float32, -s_lstm, s_lstm)
    b_hh = jax.random.uniform(ks[4], (4 * H,), jnp.float32, -s_lstm, s_lstm)
    w_fc = jax.random.uniform(ks[5], (O, H), jnp.float32, -s_fc, s_fc)
    b_fc = jax.random.uniform(ks[6], (O,), jnp.float32, -s_fc, s_fc)

    ref = lstm_reference(x, w_ih, w_hh, b_ih, b_hh, w_fc, b_fc)

    # f32 path: exercises the time-chunked grid (2 chunks) with a tight check.
    out = lstm_forward(x, w_ih, w_hh, b_ih, b_hh, w_fc, b_fc,
                       t_chunk=4, compute_dtype=jnp.float32)
    jax.block_until_ready(out)
    assert out.shape == (B, O)
    assert jnp.allclose(out, ref, atol=1e-5, rtol=1e-5), "f32 mismatch vs reference"

    # bf16 weights / gx path (production config); loose tolerance per review.
    out_bf16 = lstm_forward(x, w_ih, w_hh, b_ih, b_hh, w_fc, b_fc,
                            t_chunk=4, compute_dtype=jnp.bfloat16)
    jax.block_until_ready(out_bf16)
    assert out_bf16.shape == (B, O)
    assert jnp.allclose(out_bf16, ref, atol=1e-1, rtol=1e-1), "bf16 mismatch vs reference"

    print("KERNEL_OK")
</pallas_src>

<mosaic_0001>
module attributes {stable_mosaic.version = 11 : i64} {
  func.func @lstm_kernel(%arg0: i32, %arg1: i32, %arg2: memref<1x32x16xf32, #tpu.memory_space<vmem>>, %arg3: memref<16x512xf32, #tpu.memory_space<vmem>>, %arg4: memref<128x512xf32, #tpu.memory_space<vmem>>, %arg5: memref<1x512xf32, #tpu.memory_space<vmem>>, %arg6: memref<128x128xf32, #tpu.memory_space<vmem>>, %arg7: memref<1x128xf32, #tpu.memory_space<vmem>>, %arg8: memref<8x128xf32, #tpu.memory_space<vmem>>, %arg9: memref<8x128xf32, #tpu.memory_space<vmem>>, %arg10: memref<8x128xf32, #tpu.memory_space<vmem>>, %arg11: memref<32x512xf32, #tpu.memory_space<vmem>>) attributes {dimension_semantics = [#tpu.dimension_semantics<parallel>, #tpu.dimension_semantics<arbitrary>], iteration_bounds = array<i64: 1, 2>, scalar_prefetch = 0 : i64, scratch_operands = 3 : i64, tpu.core_type = #tpu.core_type<tc>, window_params = [{transform_indices = @transform_0, window_bounds = array<i64: 1, 32, 16>}, {pipeline_mode = #tpu.pipeline_mode<synchronous>, transform_indices = @transform_1, window_bounds = array<i64: 16, 512>}, {pipeline_mode = #tpu.pipeline_mode<synchronous>, transform_indices = @transform_2, window_bounds = array<i64: 128, 512>}, {pipeline_mode = #tpu.pipeline_mode<synchronous>, transform_indices = @transform_3, window_bounds = array<i64: 1, 512>}, {pipeline_mode = #tpu.pipeline_mode<synchronous>, transform_indices = @transform_4, window_bounds = array<i64: 128, 128>}, {pipeline_mode = #tpu.pipeline_mode<synchronous>, transform_indices = @transform_5, window_bounds = array<i64: 1, 128>}, {transform_indices = @transform_6, window_bounds = array<i64: 8, 128>}]} {
    %c0_i32 = arith.constant 0 : i32
    %0 = arith.cmpi eq, %arg1, %c0_i32 : i32
    %1 = arith.extui %0 : i1 to i32
    %c0_i32_0 = arith.constant 0 : i32
    %2 = arith.cmpi ne, %1, %c0_i32_0 : i32
    scf.if %2 {
      %cst_51 = arith.constant 0.000000e+00 : f32
      %146 = vector.broadcast %cst_51 : f32 to vector<8x128xf32>
      %c0_52 = arith.constant 0 : index
      %c0_53 = arith.constant 0 : index
      %147 = vector.load %arg9[%c0_52, %c0_53] : memref<8x128xf32, #tpu.memory_space<vmem>>, vector<8x128xf32>
      tpu.vector_store %arg9[%c0_52, %c0_53], %146 {strides = array<i32>} : memref<8x128xf32, #tpu.memory_space<vmem>>, vector<8x128xf32>,
      %cst_54 = arith.constant 0.000000e+00 : f32
      %148 = vector.broadcast %cst_54 : f32 to vector<8x128xf32>
      %c0_55 = arith.constant 0 : index
      %c0_56 = arith.constant 0 : index
      %149 = vector.load %arg10[%c0_55, %c0_56] : memref<8x128xf32, #tpu.memory_space<vmem>>, vector<8x128xf32>
      tpu.vector_store %arg10[%c0_55, %c0_56], %148 {strides = array<i32>} : memref<8x128xf32, #tpu.memory_space<vmem>>, vector<8x128xf32>,
    } else {
    }
    %c0 = arith.constant 0 : index
    %c0_1 = arith.constant 0 : index
    %c0_2 = arith.constant 0 : index
    %3 = vector.load %arg2[%c0, %c0_1, %c0_2] : memref<1x32x16xf32, #tpu.memory_space<vmem>>, vector<1x32x16xf32>
    %4 = vector.shape_cast %3 : vector<1x32x16xf32> to vector<32x16xf32>
    %c0_3 = arith.constant 0 : index
    %c0_4 = arith.constant 0 : index
    %5 = vector.load %arg3[%c0_3, %c0_4] : memref<16x512xf32, #tpu.memory_space<vmem>>, vector<16x512xf32>
    %cst = arith.constant dense<0.000000e+00> : vector<32x512xf32>
    %6 = tpu.matmul %4, %5, %cst {dimension_numbers = #tpu.dot_dimension_numbers<[1], [0], [0], [1], [0, 0, 1, 1], [], []>} : vector<32x16xf32>, vector<16x512xf32>, vector<32x512xf32> -> vector<32x512xf32>
    %c0_5 = arith.constant 0 : index
    %c0_6 = arith.constant 0 : index
    %7 = vector.load %arg5[%c0_5, %c0_6] : memref<1x512xf32, #tpu.memory_space<vmem>>, vector<1x512xf32>
    %8 = vector.broadcast %7 : vector<1x512xf32> to vector<32x512xf32>
    %9 = arith.addf %6, %8 : vector<32x512xf32>
    %c0_7 = arith.constant 0 : index
    %c0_8 = arith.constant 0 : index
    %10 = vector.load %arg11[%c0_7, %c0_8] : memref<32x512xf32, #tpu.memory_space<vmem>>, vector<32x512xf32>
    tpu.vector_store %arg11[%c0_7, %c0_8], %9 {strides = array<i32>} : memref<32x512xf32, #tpu.memory_space<vmem>>, vector<32x512xf32>,
    %c0_9 = arith.constant 0 : index
    %c0_10 = arith.constant 0 : index
    %11 = vector.load %arg9[%c0_9, %c0_10] : memref<8x128xf32, #tpu.memory_space<vmem>>, vector<8x128xf32>
    %c0_11 = arith.constant 0 : index
    %c0_12 = arith.constant 0 : index
    %12 = vector.load %arg10[%c0_11, %c0_12] : memref<8x128xf32, #tpu.memory_space<vmem>>, vector<8x128xf32>
    %c0_i32_13 = arith.constant 0 : i32
    %c8_i32 = arith.constant 8 : i32
    %13 = arith.muli %c0_i32_13, %c8_i32 : i32
    %14 = tpu.assume_multiple %13, 8 : i32
    %15 = arith.index_cast %14 : i32 to index
    %c0_14 = arith.constant 0 : index
    %16 = vector.load %arg11[%15, %c0_14] : memref<32x512xf32, #tpu.memory_space<vmem>>, vector<8x512xf32>
    %c0_15 = arith.constant 0 : index
    %c0_16 = arith.constant 0 : index
    %17 = vector.load %arg4[%c0_15, %c0_16] : memref<128x512xf32, #tpu.memory_space<vmem>>, vector<128x512xf32>
    %cst_17 = arith.constant dense<0.000000e+00> : vector<8x512xf32>
    %18 = tpu.matmul %11, %17, %cst_17 {dimension_numbers = #tpu.dot_dimension_numbers<[1], [0], [0], [1], [0, 0, 1, 1], [], []>} : vector<8x128xf32>, vector<128x512xf32>, vector<8x512xf32> -> vector<8x512xf32>
    %19 = arith.addf %16, %18 : vector<8x512xf32>
    %20 = vector.extract_strided_slice %19 {offsets = [0, 0], sizes = [8, 128], strides = [1, 1]} : vector<8x512xf32> to vector<8x128xf32>
    %21 = arith.negf %20 : vector<8x128xf32>
    %22 = math.exp %21 : vector<8x128xf32>
    %cst_18 = arith.constant 1.000000e+00 : f32
    %23 = vector.broadcast %cst_18 : f32 to vector<8x128xf32>
    %24 = arith.addf %23, %22 : vector<8x128xf32>
    %25 = arith.divf %23, %24 : vector<8x128xf32>
    %26 = vector.extract_strided_slice %19 {offsets = [0, 128], sizes = [8, 128], strides = [1, 1]} : vector<8x512xf32> to vector<8x128xf32>
    %27 = arith.negf %26 : vector<8x128xf32>
    %28 = math.exp %27 : vector<8x128xf32>
    %cst_19 = arith.constant 1.000000e+00 : f32
    %29 = vector.broadcast %cst_19 : f32 to vector<8x128xf32>
    %30 = arith.addf %29, %28 : vector<8x128xf32>
    %31 = arith.divf %29, %30 : vector<8x128xf32>
    %32 = vector.extract_strided_slice %19 {offsets = [0, 256], sizes = [8, 128], strides = [1, 1]} : vector<8x512xf32> to vector<8x128xf32>
    %33 = math.tanh %32 : vector<8x128xf32>
    %34 = vector.extract_strided_slice %19 {offsets = [0, 384], sizes = [8, 128], strides = [1, 1]} : vector<8x512xf32> to vector<8x128xf32>
    %35 = arith.negf %34 : vector<8x128xf32>
    %36 = math.exp %35 : vector<8x128xf32>
    %cst_20 = arith.constant 1.000000e+00 : f32
    %37 = vector.broadcast %cst_20 : f32 to vector<8x128xf32>
    %38 = arith.addf %37, %36 : vector<8x128xf32>
    %39 = arith.divf %37, %38 : vector<8x128xf32>
    %40 = arith.mulf %31, %12 : vector<8x128xf32>
    %41 = arith.mulf %25, %33 : vector<8x128xf32>
    %42 = arith.addf %40, %41 : vector<8x128xf32>
    %43 = math.tanh %42 : vector<8x128xf32>
    %44 = arith.mulf %39, %43 : vector<8x128xf32>
    %c1_i32 = arith.constant 1 : i32
    %c8_i32_21 = arith.constant 8 : i32
    %45 = arith.muli %c1_i32, %c8_i32_21 : i32
    %46 = tpu.assume_multiple %45, 8 : i32
    %47 = arith.index_cast %46 : i32 to index
    %c0_22 = arith.constant 0 : index
    %48 = vector.load %arg11[%47, %c0_22] : memref<32x512xf32, #tpu.memory_space<vmem>>, vector<8x512xf32>
    %c0_23 = arith.constant 0 : index
    %c0_24 = arith.constant 0 : index
    %49 = vector.load %arg4[%c0_23, %c0_24] : memref<128x512xf32, #tpu.memory_space<vmem>>, vector<128x512xf32>
    %cst_25 = arith.constant dense<0.000000e+00> : vector<8x512xf32>
    %50 = tpu.matmul %44, %49, %cst_25 {dimension_numbers = #tpu.dot_dimension_numbers<[1], [0], [0], [1], [0, 0, 1, 1], [], []>} : vector<8x128xf32>, vector<128x512xf32>, vector<8x512xf32> -> vector<8x512xf32>
    %51 = arith.addf %48, %50 : vector<8x512xf32>
    %52 = vector.extract_strided_slice %51 {offsets = [0, 0], sizes = [8, 128], strides = [1, 1]} : vector<8x512xf32> to vector<8x128xf32>
    %53 = arith.negf %52 : vector<8x128xf32>
    %54 = math.exp %53 : vector<8x128xf32>
    %cst_26 = arith.constant 1.000000e+00 : f32
    %55 = vector.broadcast %cst_26 : f32 to vector<8x128xf32>
    %56 = arith.addf %55, %54 : vector<8x128xf32>
    %57 = arith.divf %55, %56 : vector<8x128xf32>
    %58 = vector.extract_strided_slice %51 {offsets = [0, 128], sizes = [8, 128], strides = [1, 1]} : vector<8x512xf32> to vector<8x128xf32>
    %59 = arith.negf %58 : vector<8x128xf32>
    %60 = math.exp %59 : vector<8x128xf32>
    %cst_27 = arith.constant 1.000000e+00 : f32
    %61 = vector.broadcast %cst_27 : f32 to vector<8x128xf32>
    %62 = arith.addf %61, %60 : vector<8x128xf32>
    %63 = arith.divf %61, %62 : vector<8x128xf32>
    %64 = vector.extract_strided_slice %51 {offsets = [0, 256], sizes = [8, 128], strides = [1, 1]} : vector<8x512xf32> to vector<8x128xf32>
    %65 = math.tanh %64 : vector<8x128xf32>
    %66 = vector.extract_strided_slice %51 {offsets = [0, 384], sizes = [8, 128], strides = [1, 1]} : vector<8x512xf32> to vector<8x128xf32>
    %67 = arith.negf %66 : vector<8x128xf32>
    %68 = math.exp %67 : vector<8x128xf32>
    %cst_28 = arith.constant 1.000000e+00 : f32
    %69 = vector.broadcast %cst_28 : f32 to vector<8x128xf32>
    %70 = arith.addf %69, %68 : vector<8x128xf32>
    %71 = arith.divf %69, %70 : vector<8x128xf32>
    %72 = arith.mulf %63, %42 : vector<8x128xf32>
    %73 = arith.mulf %57, %65 : vector<8x128xf32>
    %74 = arith.addf %72, %73 : vector<8x128xf32>
    %75 = math.tanh %74 : vector<8x128xf32>
    %76 = arith.mulf %71, %75 : vector<8x128xf32>
    %c2_i32 = arith.constant 2 : i32
    %c8_i32_29 = arith.constant 8 : i32
    %77 = arith.muli %c2_i32, %c8_i32_29 : i32
    %78 = tpu.assume_multiple %77, 8 : i32
    %79 = arith.index_cast %78 : i32 to index
    %c0_30 = arith.constant 0 : index
    %80 = vector.load %arg11[%79, %c0_30] : memref<32x512xf32, #tpu.memory_space<vmem>>, vector<8x512xf32>
    %c0_31 = arith.constant 0 : index
    %c0_32 = arith.constant 0 : index
    %81 = vector.load %arg4[%c0_31, %c0_32] : memref<128x512xf32, #tpu.memory_space<vmem>>, vector<128x512xf32>
    %cst_33 = arith.constant dense<0.000000e+00> : vector<8x512xf32>
    %82 = tpu.matmul %76, %81, %cst_33 {dimension_numbers = #tpu.dot_dimension_numbers<[1], [0], [0], [1], [0, 0, 1, 1], [], []>} : vector<8x128xf32>, vector<128x512xf32>, vector<8x512xf32> -> vector<8x512xf32>
    %83 = arith.addf %80, %82 : vector<8x512xf32>
    %84 = vector.extract_strided_slice %83 {offsets = [0, 0], sizes = [8, 128], strides = [1, 1]} : vector<8x512xf32> to vector<8x128xf32>
    %85 = arith.negf %84 : vector<8x128xf32>
    %86 = math.exp %85 : vector<8x128xf32>
    %cst_34 = arith.constant 1.000000e+00 : f32
    %87 = vector.broadcast %cst_34 : f32 to vector<8x128xf32>
    %88 = arith.addf %87, %86 : vector<8x128xf32>
    %89 = arith.divf %87, %88 : vector<8x128xf32>
    %90 = vector.extract_strided_slice %83 {offsets = [0, 128], sizes = [8, 128], strides = [1, 1]} : vector<8x512xf32> to vector<8x128xf32>
    %91 = arith.negf %90 : vector<8x128xf32>
    %92 = math.exp %91 : vector<8x128xf32>
    %cst_35 = arith.constant 1.000000e+00 : f32
    %93 = vector.broadcast %cst_35 : f32 to vector<8x128xf32>
    %94 = arith.addf %93, %92 : vector<8x128xf32>
    %95 = arith.divf %93, %94 : vector<8x128xf32>
    %96 = vector.extract_strided_slice %83 {offsets = [0, 256], sizes = [8, 128], strides = [1, 1]} : vector<8x512xf32> to vector<8x128xf32>
    %97 = math.tanh %96 : vector<8x128xf32>
    %98 = vector.extract_strided_slice %83 {offsets = [0, 384], sizes = [8, 128], strides = [1, 1]} : vector<8x512xf32> to vector<8x128xf32>
    %99 = arith.negf %98 : vector<8x128xf32>
    %100 = math.exp %99 : vector<8x128xf32>
    %cst_36 = arith.constant 1.000000e+00 : f32
    %101 = vector.broadcast %cst_36 : f32 to vector<8x128xf32>
    %102 = arith.addf %101, %100 : vector<8x128xf32>
    %103 = arith.divf %101, %102 : vector<8x128xf32>
    %104 = arith.mulf %95, %74 : vector<8x128xf32>
    %105 = arith.mulf %89, %97 : vector<8x128xf32>
    %106 = arith.addf %104, %105 : vector<8x128xf32>
    %107 = math.tanh %106 : vector<8x128xf32>
    %108 = arith.mulf %103, %107 : vector<8x128xf32>
    %c3_i32 = arith.constant 3 : i32
    %c8_i32_37 = arith.constant 8 : i32
    %109 = arith.muli %c3_i32, %c8_i32_37 : i32
    %110 = tpu.assume_multiple %109, 8 : i32
    %111 = arith.index_cast %110 : i32 to index
    %c0_38 = arith.constant 0 : index
    %112 = vector.load %arg11[%111, %c0_38] : memref<32x512xf32, #tpu.memory_space<vmem>>, vector<8x512xf32>
    %c0_39 = arith.constant 0 : index
    %c0_40 = arith.constant 0 : index
    %113 = vector.load %arg4[%c0_39, %c0_40] : memref<128x512xf32, #tpu.memory_space<vmem>>, vector<128x512xf32>
    %cst_41 = arith.constant dense<0.000000e+00> : vector<8x512xf32>
    %114 = tpu.matmul %108, %113, %cst_41 {dimension_numbers = #tpu.dot_dimension_numbers<[1], [0], [0], [1], [0, 0, 1, 1], [], []>} : vector<8x128xf32>, vector<128x512xf32>, vector<8x512xf32> -> vector<8x512xf32>
    %115 = arith.addf %112, %114 : vector<8x512xf32>
    %116 = vector.extract_strided_slice %115 {offsets = [0, 0], sizes = [8, 128], strides = [1, 1]} : vector<8x512xf32> to vector<8x128xf32>
    %117 = arith.negf %116 : vector<8x128xf32>
    %118 = math.exp %117 : vector<8x128xf32>
    %cst_42 = arith.constant 1.000000e+00 : f32
    %119 = vector.broadcast %cst_42 : f32 to vector<8x128xf32>
    %120 = arith.addf %119, %118 : vector<8x128xf32>
    %121 = arith.divf %119, %120 : vector<8x128xf32>
    %122 = vector.extract_strided_slice %115 {offsets = [0, 128], sizes = [8, 128], strides = [1, 1]} : vector<8x512xf32> to vector<8x128xf32>
    %123 = arith.negf %122 : vector<8x128xf32>
    %124 = math.exp %123 : vector<8x128xf32>
    %cst_43 = arith.constant 1.000000e+00 : f32
    %125 = vector.broadcast %cst_43 : f32 to vector<8x128xf32>
    %126 = arith.addf %125, %124 : vector<8x128xf32>
    %127 = arith.divf %125, %126 : vector<8x128xf32>
    %128 = vector.extract_strided_slice %115 {offsets = [0, 256], sizes = [8, 128], strides = [1, 1]} : vector<8x512xf32> to vector<8x128xf32>
    %129 = math.tanh %128 : vector<8x128xf32>
    %130 = vector.extract_strided_slice %115 {offsets = [0, 384], sizes = [8, 128], strides = [1, 1]} : vector<8x512xf32> to vector<8x128xf32>
    %131 = arith.negf %130 : vector<8x128xf32>
    %132 = math.exp %131 : vector<8x128xf32>
    %cst_44 = arith.constant 1.000000e+00 : f32
    %133 = vector.broadcast %cst_44 : f32 to vector<8x128xf32>
    %134 = arith.addf %133, %132 : vector<8x128xf32>
    %135 = arith.divf %133, %134 : vector<8x128xf32>
    %136 = arith.mulf %127, %106 : vector<8x128xf32>
    %137 = arith.mulf %121, %129 : vector<8x128xf32>
    %138 = arith.addf %136, %137 : vector<8x128xf32>
    %139 = math.tanh %138 : vector<8x128xf32>
    %140 = arith.mulf %135, %139 : vector<8x128xf32>
    %c4_i32 = arith.constant 4 : i32
    %c0_45 = arith.constant 0 : index
    %c0_46 = arith.constant 0 : index
    %141 = vector.load %arg9[%c0_45, %c0_46] : memref<8x128xf32, #tpu.memory_space<vmem>>, vector<8x128xf32>
    tpu.vector_store %arg9[%c0_45, %c0_46], %140 {strides = array<i32>} : memref<8x128xf32, #tpu.memory_space<vmem>>, vector<8x128xf32>,
    %c0_47 = arith.constant 0 : index
    %c0_48 = arith.constant 0 : index
    %142 = vector.load %arg10[%c0_47, %c0_48] : memref<8x128xf32, #tpu.memory_space<vmem>>, vector<8x128xf32>
    tpu.vector_store %arg10[%c0_47, %c0_48], %138 {strides = array<i32>} : memref<8x128xf32, #tpu.memory_space<vmem>>, vector<8x128xf32>,
    %c1_i32_49 = arith.constant 1 : i32
    %143 = arith.cmpi eq, %arg1, %c1_i32_49 : i32
    %144 = arith.extui %143 : i1 to i32
    %c0_i32_50 = arith.constant 0 : i32
    %145 = arith.cmpi ne, %144, %c0_i32_50 : i32
    scf.if %145 {
      %c0_51 = arith.constant 0 : index
      %c0_52 = arith.constant 0 : index
      %146 = vector.load %arg6[%c0_51, %c0_52] : memref<128x128xf32, #tpu.memory_space<vmem>>, vector<128x128xf32>
      %cst_53 = arith.constant dense<0.000000e+00> : vector<8x128xf32>
      %147 = tpu.matmul %140, %146, %cst_53 {dimension_numbers = #tpu.dot_dimension_numbers<[1], [0], [0], [1], [0, 0, 1, 1], [], []>} : vector<8x128xf32>, vector<128x128xf32>, vector<8x128xf32> -> vector<8x128xf32>
      %c0_54 = arith.constant 0 : index
      %c0_55 = arith.constant 0 : index
      %148 = vector.load %arg7[%c0_54, %c0_55] : memref<1x128xf32, #tpu.memory_space<vmem>>, vector<1x128xf32>
      %149 = vector.broadcast %148 : vector<1x128xf32> to vector<8x128xf32>
      %150 = arith.addf %147, %149 : vector<8x128xf32>
      %c0_56 = arith.constant 0 : index
      %c0_57 = arith.constant 0 : index
      %151 = vector.load %arg8[%c0_56, %c0_57] : memref<8x128xf32, #tpu.memory_space<vmem>>, vector<8x128xf32>
      tpu.vector_store %arg8[%c0_56, %c0_57], %150 {strides = array<i32>} : memref<8x128xf32, #tpu.memory_space<vmem>>, vector<8x128xf32>,
    } else {
    }
    return
  }
  func.func @transform_0(%arg0: i32, %arg1: i32) -> (i32, i32, i32) {
    %c0_i32 = arith.constant 0 : i32
    %c0_i32_0 = arith.constant 0 : i32
    return %arg0, %arg1, %c0_i32 : i32, i32, i32
  }
  func.func @transform_1(%arg0: i32, %arg1: i32) -> (i32, i32) {
    %c0_i32 = arith.constant 0 : i32
    %c0_i32_0 = arith.constant 0 : i32
    %c0_i32_1 = arith.constant 0 : i32
    return %c0_i32, %c0_i32_0 : i32, i32
  }
  func.func @transform_2(%arg0: i32, %arg1: i32) -> (i32, i32) {
    %c0_i32 = arith.constant 0 : i32
    %c0_i32_0 = arith.constant 0 : i32
    %c0_i32_1 = arith.constant 0 : i32
    return %c0_i32, %c0_i32_0 : i32, i32
  }
  func.func @transform_3(%arg0: i32, %arg1: i32) -> (i32, i32) {
    %c0_i32 = arith.constant 0 : i32
    %c0_i32_0 = arith.constant 0 : i32
    %c0_i32_1 = arith.constant 0 : i32
    return %c0_i32, %c0_i32_0 : i32, i32
  }
  func.func @transform_4(%arg0: i32, %arg1: i32) -> (i32, i32) {
    %c0_i32 = arith.constant 0 : i32
    %c0_i32_0 = arith.constant 0 : i32
    %c0_i32_1 = arith.constant 0 : i32
    return %c0_i32, %c0_i32_0 : i32, i32
  }
  func.func @transform_5(%arg0: i32, %arg1: i32) -> (i32, i32) {
    %c0_i32 = arith.constant 0 : i32
    %c0_i32_0 = arith.constant 0 : i32
    %c0_i32_1 = arith.constant 0 : i32
    return %c0_i32, %c0_i32_0 : i32, i32
  }
  func.func @transform_6(%arg0: i32, %arg1: i32) -> (i32, i32) {
    %c0_i32 = arith.constant 0 : i32
    %c0_i32_0 = arith.constant 0 : i32
    return %arg0, %c0_i32 : i32, i32
  }
}

</mosaic_0001>

<llo_original>
// kernel: lstm_forward.1
$region0: #{lstm_forward.1}
  #allocation0 [shape = 'u32[]', space=smem, size = 0x4, offset = 0x4, fixed_abs, tag = 'smem constant byte address 0x4 - core index']
  #allocation1 [shape = 'u32[144,128]{1,0:T(1,128)}', space=vmem, size = 0x12000, scoped, tag = 'internal scratch']
  #allocation2 [shape = 'f32[8,128]{1,0:T(8,128)}', space=vmem, size = 0x1000, scoped, tag = 'scratch operand']
  #allocation3 [shape = 'f32[8,128]{1,0:T(8,128)}', space=vmem, size = 0x1000, scoped, tag = 'scratch operand']
  #allocation4 [shape = 'f32[32,512]{1,0:T(8,128)}', space=vmem, size = 0x10000, scoped, tag = 'scratch operand']
  %s0 = inlined_call_operand.vmem [shape: f32[1,64,16], index: 0, kind: input, shape index: {}]
  %s1 = inlined_call_operand.vmem [shape: f32[16,512], index: 1, kind: input, shape index: {}]
  %s2 = inlined_call_operand.vmem [shape: f32[128,512], index: 2, kind: input, shape index: {}]
  %s3 = inlined_call_operand.vmem [shape: f32[1,512], index: 3, kind: input, shape index: {}]
  %s4 = inlined_call_operand.vmem [shape: f32[128,128], index: 4, kind: input, shape index: {}]
  %s5 = inlined_call_operand.vmem [shape: f32[1,128], index: 5, kind: input, shape index: {}]
  %s6 = inlined_call_operand.vmem [shape: f32[8,128], index: 6, kind: output, shape index: {}]
  %s7 = sld [smem:[#allocation0]]
  $region65: #{lstm_forward.1} parent=0
    _
  %s9 = ssub.s32 1, %s7
  %s10 = scalar_select 0, %s9, %s7
  loop: start=0, step=1, limit=4
  $region2: #{lstm_forward.1} parent=0 // loop_pre_header
    _
  $region3: #{lstm_forward.1} parent=0 // loop_header
    %s12 = sphi 0, %s16
    %p13 = scmp.ge.s32.totalorder %s12, 4
    %s19 = sphi 0, %s31
    %s20 = sphi 0, %s27
    %s21 = sphi 0, %s19
    %s22 = sphi 0, %s20
    %s23 = sphi 0, %s21
    %s24 = sphi 0, %s22
    %s36 = sphi 0, %s38
    %s39 = sphi 0, %s36
    %s40 = sphi 0, %s39
    %s56 = sphi 0, %s40
    %s60 = sphi 0, %s60
    %s62 = sphi 0, %s60
    %s63 = sphi 0, %s62
    %s77 = sphi 0, %s63
    %s81 = sphi 0, %s81
    %s83 = sphi 0, %s81
    %s84 = sphi 0, %s83
    %s98 = sphi 0, %s84
    %s102 = sphi 0, %s102
    %s104 = sphi 0, %s102
    %s105 = sphi 0, %s104
    %s119 = sphi 0, %s105
    %s123 = sphi 0, %s123
    %s125 = sphi 0, %s123
    %s126 = sphi 0, %s125
    %s140 = sphi 0, %s126
    %s144 = sphi 0, %s144
    %s146 = sphi 0, %s144
    %s147 = sphi 0, %s146
    %s161 = sphi 0, %s147
    %s167 = sphi 0, %s169
    %s170 = sphi 0, %s167
    %s171 = sphi 0, %s170
    %s187 = sphi 0, %s171
  $region4: #{lstm_forward.1} parent=0 // loop_header_branch
    %15 = sbr.rel (%p13) target = $region8
  $region5: #{lstm_forward.1} parent=0 // loop_body
    %s17 = ssub.s32 %s12, 1
    %s18 = ssub.s32 %s12, 2
    %s25 = sadd.s32 1, %s20
    %p26 = scmp.ge.s32.totalorder %s25, 2
    %s27 = scalar_select %p26, 0, %s25
    %s28 = sadd.s32 1, %s19
    %s29 = scalar_select %p26, %s28, %s19
    %p30 = scmp.ge.s32.totalorder %s29, 1
    %s31 = scalar_select %p30, 0, %s29
    %s32 = ssub.s32 %s19, %s31
    %s33 = ssub.s32 %s20, %s27
    %s34 = sor.u32 %s32, %s33
    %p35 = scmp.eq.s32.totalorder %s34, 0
    %s37 = sadd.s32 %s36, 1
    %s38 = scalar_select %p35, %s36, %s37
    %p41 = pneg %p35
    %p42 = scmp.eq.s32.totalorder %s12, 1
    %p43 = por %p41, %p42
    %p44 = scmp.ne.s32.totalorder %s36, %s39
    %p45 = scmp.eq.s32.totalorder %s12, 0
    %p46 = por %p44, %p45
    %p47 = scmp.ne.s32.totalorder %s36, %s39
    %p48 = scmp.eq.s32.totalorder %s17, 1
    %p49 = por %p47, %p48
    %p50 = scmp.ne.s32.totalorder %s39, %s40
    %p51 = scmp.eq.s32.totalorder %s17, 0
    %p52 = por %p50, %p51
    %p53 = scmp.ne.s32.totalorder %s39, %s40
    %p54 = scmp.eq.s32.totalorder %s18, 1
    %p55 = por %p53, %p54
    %p57 = scmp.ne.s32.totalorder %s40, %s56
    %p58 = scmp.eq.s32.totalorder %s18, 0
    %p59 = por %p57, %p58
    %s61 = sadd.s32 %s60, 1
    %p64 = scmp.eq.s32.totalorder %s12, 1
    %p65 = scmp.ne.s32.totalorder %s60, %s62
    %p66 = scmp.eq.s32.totalorder %s12, 0
    %p67 = por %p65, %p66
    %p68 = scmp.ne.s32.totalorder %s60, %s62
    %p69 = scmp.eq.s32.totalorder %s17, 1
    %p70 = por %p68, %p69
    %p71 = scmp.ne.s32.totalorder %s62, %s63
    %p72 = scmp.eq.s32.totalorder %s17, 0
    %p73 = por %p71, %p72
    %p74 = scmp.ne.s32.totalorder %s62, %s63
    %p75 = scmp.eq.s32.totalorder %s18, 1
    %p76 = por %p74, %p75
    %p78 = scmp.ne.s32.totalorder %s63, %s77
    %p79 = scmp.eq.s32.totalorder %s18, 0
    %p80 = por %p78, %p79
    %s82 = sadd.s32 %s81, 1
    %p85 = scmp.eq.s32.totalorder %s12, 1
    %p86 = scmp.ne.s32.totalorder %s81, %s83
    %p87 = scmp.eq.s32.totalorder %s12, 0
    %p88 = por %p86, %p87
    %p89 = scmp.ne.s32.totalorder %s81, %s83
    %p90 = scmp.eq.s32.totalorder %s17, 1
    %p91 = por %p89, %p90
    %p92 = scmp.ne.s32.totalorder %s83, %s84
    %p93 = scmp.eq.s32.totalorder %s17, 0
    %p94 = por %p92, %p93
    %p95 = scmp.ne.s32.totalorder %s83, %s84
    %p96 = scmp.eq.s32.totalorder %s18, 1
    %p97 = por %p95, %p96
    %p99 = scmp.ne.s32.totalorder %s84, %s98
    %p100 = scmp.eq.s32.totalorder %s18, 0
    %p101 = por %p99, %p100
    %s103 = sadd.s32 %s102, 1
    %p106 = scmp.eq.s32.totalorder %s12, 1
    %p107 = scmp.ne.s32.totalorder %s102, %s104
    %p108 = scmp.eq.s32.totalorder %s12, 0
    %p109 = por %p107, %p108
    %p110 = scmp.ne.s32.totalorder %s102, %s104
    %p111 = scmp.eq.s32.totalorder %s17, 1
    %p112 = por %p110, %p111
    %p113 = scmp.ne.s32.totalorder %s104, %s105
    %p114 = scmp.eq.s32.totalorder %s17, 0
    %p115 = por %p113, %p114
    %p116 = scmp.ne.s32.totalorder %s104, %s105
    %p117 = scmp.eq.s32.totalorder %s18, 1
    %p118 = por %p116, %p117
    %p120 = scmp.ne.s32.totalorder %s105, %s119
    %p121 = scmp.eq.s32.totalorder %s18, 0
    %p122 = por %p120, %p121
    %s124 = sadd.s32 %s123, 1
    %p127 = scmp.eq.s32.totalorder %s12, 1
    %p128 = scmp.ne.s32.totalorder %s123, %s125
    %p129 = scmp.eq.s32.totalorder %s12, 0
    %p130 = por %p128, %p129
    %p131 = scmp.ne.s32.totalorder %s123, %s125
    %p132 = scmp.eq.s32.totalorder %s17, 1
    %p133 = por %p131, %p132
    %p134 = scmp.ne.s32.totalorder %s125, %s126
    %p135 = scmp.eq.s32.totalorder %s17, 0
    %p136 = por %p134, %p135
    %p137 = scmp.ne.s32.totalorder %s125, %s126
    %p138 = scmp.eq.s32.totalorder %s18, 1
    %p139 = por %p137, %p138
    %p141 = scmp.ne.s32.totalorder %s126, %s140
    %p142 = scmp.eq.s32.totalorder %s18, 0
    %p143 = por %p141, %p142
    %s145 = sadd.s32 %s144, 1
    %p148 = scmp.eq.s32.totalorder %s12, 1
    %p149 = scmp.ne.s32.totalorder %s144, %s146
    %p150 = scmp.eq.s32.totalorder %s12, 0
    %p151 = por %p149, %p150
    %p152 = scmp.ne.s32.totalorder %s144, %s146
    %p153 = scmp.eq.s32.totalorder %s17, 1
    %p154 = por %p152, %p153
    %p155 = scmp.ne.s32.totalorder %s146, %s147
    %p156 = scmp.eq.s32.totalorder %s17, 0
    %p157 = por %p155, %p156
    %p158 = scmp.ne.s32.totalorder %s146, %s147
    %p159 = scmp.eq.s32.totalorder %s18, 1
    %p160 = por %p158, %p159
    %p162 = scmp.ne.s32.totalorder %s147, %s161
    %p163 = scmp.eq.s32.totalorder %s18, 0
    %p164 = por %p162, %p163
    %s165 = ssub.s32 %s19, %s31
    %p166 = scmp.eq.s32.totalorder %s165, 0
    %s168 = sadd.s32 %s167, 1
    %s169 = scalar_select %p166, %s167, %s168
    %p172 = pneg %p166
    %p173 = scmp.eq.s32.totalorder %s12, 1
    %p174 = por %p172, %p173
    %p175 = scmp.ne.s32.totalorder %s167, %s170
    %p176 = scmp.eq.s32.totalorder %s12, 0
    %p177 = por %p175, %p176
    %p178 = scmp.ne.s32.totalorder %s167, %s170
    %p179 = scmp.eq.s32.totalorder %s17, 1
    %p180 = por %p178, %p179
    %p181 = scmp.ne.s32.totalorder %s170, %s171
    %p182 = scmp.eq.s32.totalorder %s17, 0
    %p183 = por %p181, %p182
    %p184 = scmp.ne.s32.totalorder %s170, %s171
    %p185 = scmp.eq.s32.totalorder %s18, 1
    %p186 = por %p184, %p185
    %p188 = scmp.ne.s32.totalorder %s171, %s187
    %p189 = scmp.eq.s32.totalorder %s18, 0
    %p190 = por %p188, %p189
    %p191 = scmp.le.s32.totalorder 1, %s12
    %p192 = scmp.lt.s32.totalorder %s12, 3
    %p193 = pnand %p191, %p192
    %p194 = pneg %p193
    // Predicated region
    $region9: #{lstm_forward.1} parent=5 // pred_check
      _
    $region10: #{lstm_forward.1} parent=5 // pred_check_branch
      %196 = sbr.rel (%p193) target = $region12
    $region11: #{lstm_forward.1} parent=5 // pred_region
      %s197 = ssub.s32 %s12, 1
      // Predicated region
      $region13: #{lstm_forward.1} parent=11 // pred_check
        %p198 = pneg %p73
      $region14: #{lstm_forward.1} parent=11 // pred_check_branch
        %200 = sbr.rel (%p198) target = $region16
      $region15: #{lstm_forward.1} parent=11 // pred_region
        _
      $region16: #{lstm_forward.1} parent=11 // pred_fallthru
        _
      // Predicated region
      $region17: #{lstm_forward.1} parent=11 // pred_check
        %p201 = pneg %p94
      $region18: #{lstm_forward.1} parent=11 // pred_check_branch
        %203 = sbr.rel (%p201) target = $region20
      $region19: #{lstm_forward.1} parent=11 // pred_region
        _
      $region20: #{lstm_forward.1} parent=11 // pred_fallthru
        _
      // Predicated region
      $region21: #{lstm_forward.1} parent=11 // pred_check
        %p204 = pneg %p115
      $region22: #{lstm_forward.1} parent=11 // pred_check_branch
        %206 = sbr.rel (%p204) target = $region24
      $region23: #{lstm_forward.1} parent=11 // pred_region
        _
      $region24: #{lstm_forward.1} parent=11 // pred_fallthru
        _
      // Predicated region
      $region25: #{lstm_forward.1} parent=11 // pred_check
        %p207 = pneg %p136
      $region26: #{lstm_forward.1} parent=11 // pred_check_branch
        %209 = sbr.rel (%p207) target = $region28
      $region27: #{lstm_forward.1} parent=11 // pred_region
        _
      $region28: #{lstm_forward.1} parent=11 // pred_fallthru
        _
      // Predicated region
      $region29: #{lstm_forward.1} parent=11 // pred_check
        %p210 = pneg %p157
      $region30: #{lstm_forward.1} parent=11 // pred_check_branch
        %212 = sbr.rel (%p210) target = $region32
      $region31: #{lstm_forward.1} parent=11 // pred_region
        _
      $region32: #{lstm_forward.1} parent=11 // pred_fallthru
        _
    $region12: #{lstm_forward.1} parent=5 // pred_fallthru
      _
    %p213 = scmp.lt.s32.totalorder %s12, 2
    // Predicated region
    $region33: #{lstm_forward.1} parent=5 // pred_check
      %p214 = pneg %p213
    $region34: #{lstm_forward.1} parent=5 // pred_check_branch
      %216 = sbr.rel (%p214) target = $region36
    $region35: #{lstm_forward.1} parent=5 // pred_region
      // Predicated region
      $region37: #{lstm_forward.1} parent=35 // pred_check
        %p217 = pneg %p46
      $region38: #{lstm_forward.1} parent=35 // pred_check_branch
        %219 = sbr.rel (%p217) target = $region40
      $region39: #{lstm_forward.1} parent=35 // pred_region
        %s220 = smul.u32 4, %s20
        %p221 = scmp.lt.s32.totalorder %s19, 0
        %s222 = scalar_select %p221, %s19, 0
        %p223 = scmp.lt.s32.totalorder %s220, 7
        %s224 = scalar_select %p223, %s220, 7
        %s225 = smul.addr %s222, 8
        %s226 = sadd.s32 %s224, %s225
        %s227 = smul.addr %s226, 8
        %s228 = scalar_lea.vmem %s0, %s227
        %s229 = smul.u32 4, %s20
      $region40: #{lstm_forward.1} parent=35 // pred_fallthru
        _
    $region36: #{lstm_forward.1} parent=5 // pred_fallthru
      _
    %p230 = scmp.le.s32.totalorder 1, %s12
    %p231 = scmp.lt.s32.totalorder %s12, 3
    %p232 = pnand %p230, %p231
    %p233 = pneg %p232
    // Predicated region
    $region41: #{lstm_forward.1} parent=5 // pred_check
      _
    $region42: #{lstm_forward.1} parent=5 // pred_check_branch
      %235 = sbr.rel (%p232) target = $region44
    $region43: #{lstm_forward.1} parent=5 // pred_region
      %s236 = ssub.s32 %s12, 1
      %s237 = smul.u32 4, %s22
      %p238 = scmp.lt.s32.totalorder %s21, 0
      %s239 = scalar_select %p238, %s21, 0
      %p240 = scmp.lt.s32.totalorder %s237, 7
      %s241 = scalar_select %p240, %s237, 7
      %s242 = smul.addr %s239, 8
      %s243 = sadd.s32 %s241, %s242
      %s244 = smul.addr %s243, 8
      %s245 = scalar_lea.vmem %s0, %s244
      %p246 = pneg %p52
      %p247 = pneg %p49
      %p248 = pneg %p73
      %p249 = pneg %p70
      %p250 = pneg %p94
      %p251 = pneg %p91
      %p252 = pneg %p115
      %p253 = pneg %p112
      %p254 = pneg %p136
      %p255 = pneg %p133
      %p256 = pneg %p157
      %p257 = pneg %p154
      %p258 = pneg %p183
      %p259 = pneg %p180
      %p260 = scmp.lt.s32.totalorder %s21, 0
      %s261 = scalar_select %p260, %s21, 0
      %s262 = smul.addr %s261, 8
      %s263 = scalar_lea.vmem %s6, %s262
      %s264 = smul.u32 4, %s22
      %p265 = scmp.lt.s32.totalorder %s21, 0
      %s266 = scalar_select %p265, %s21, 0
      %p267 = scmp.lt.s32.totalorder %s264, 7
      %s268 = scalar_select %p267, %s264, 7
      %s269 = smul.addr %s266, 8
      %s270 = sadd.s32 %s268, %s269
      %s271 = smul.addr %s270, 8
      %s272 = scalar_lea.vmem %s0, %s271
      %s273 = smul.u32 4, %s22
      %p274 = scmp.lt.s32.totalorder %s21, 0
      %s275 = scalar_select %p274, %s21, 0
      %s276 = smul.addr %s275, 8
      %s277 = scalar_lea.vmem %s6, %s276
      %p278 = scmp.eq.s32.totalorder %s22, 0
      // Predicated region
      $region45: #{lstm_forward.1} parent=43 // pred_check
        %p279 = pneg %p278
      $region46: #{lstm_forward.1} parent=43 // pred_check_branch
        %281 = sbr.rel (%p279) target = $region48
      $region47: #{lstm_forward.1} parent=43 // pred_region
        %282 = vst [vmem:[#allocation2] sm:$0xff] 0.0
        %283 = vst [vmem:[#allocation3] sm:$0xff] 0.0
      $region48: #{lstm_forward.1} parent=43 // pred_fallthru
        _
      %v284 = vld [vmem:[%s272] sm:$0xff]
      %v285 = vld [vmem:[%s272 + $0x8] sm:$0xff]
      %v286 = vld [vmem:[%s272 + $0x10] sm:$0xff]
      %v287 = vld [vmem:[%s272 + $0x18] sm:$0xff]
      %v288 = vld [vmem:[%s1] sm:$0xff]
      %v289 = vld [vmem:[%s1 + $0x8] sm:$0xff]
      %v290 = vld [vmem:[%s1 + $0x10] sm:$0xff]
      %v291 = vld [vmem:[%s1 + $0x18] sm:$0xff]
      %v292 = vld [vmem:[%s1 + $0x20] sm:$0xff]
      %v293 = vld [vmem:[%s1 + $0x28] sm:$0xff]
      %v294 = vld [vmem:[%s1 + $0x30] sm:$0xff]
      %v295 = vld [vmem:[%s1 + $0x38] sm:$0xff]
      %v296 = vld [vmem:[%s3] sm:$0xf]
      %v298 = vlaneseq
      %v299 = vshrl.u32 %v298, 7
      %v300 = vsub.s32 0, %v299
      %v301 = vrot.slane %v296, %v300
      %v302 = vlaneseq
      %v303 = vshrl.u32 %v302, 7
      %v304 = vsub.s32 1, %v303
      %v305 = vrot.slane %v296, %v304
      %v306 = vlaneseq
      %v307 = vshrl.u32 %v306, 7
      %v308 = vsub.s32 2, %v307
      %v309 = vrot.slane %v296, %v308
      %v310 = vlaneseq
      %v311 = vshrl.u32 %v310, 7
      %v312 = vsub.s32 3, %v311
      %v313 = vrot.slane %v296, %v312
      %vm318 = vcmask 130048
      %v320 = vsel %vm318, %v284, 0
      %v323 = vsel %vm318, %v285, 0
      %v326 = vsel %vm318, %v286, 0
      %v329 = vsel %vm318, %v287, 0
      %331 = vmatprep.subr.mxu0 %v289
      %332 = vmatpush1.msra.mxu0 %v288
      %333 = vmatprep.subr.mxu0 %v293
      %334 = vmatpush1.msra.mxu0 %v292
      %335 = vmatprep.subr.mxu0 0.0
      %336 = vmatpush1.msra.mxu0 0.0
      %337 = vmatprep.subr.mxu0 0.0
      %338 = vmatpush1.msra.mxu0 0.0
      %339 = vmatprep.subr.mxu0 0.0
      %340 = vmatpush1.msra.mxu0 0.0
      %341 = vmatprep.subr.mxu0 0.0
      %342 = vmatpush1.msra.mxu0 0.0
      %343 = vmatprep.subr.mxu0 0.0
      %344 = vmatpush1.msra.mxu0 0.0
      %345 = vmatprep.subr.mxu0 0.0
      %346 = vmatpush1.msra.mxu0 0.0
      %347 = vmatprep.subr.mxu0 0.0
      %348 = vmatpush1.msra.mxu0 0.0
      %349 = vmatprep.subr.mxu0 0.0
      %350 = vmatpush1.msra.mxu0 0.0
      %351 = vmatprep.subr.mxu0 0.0
      %352 = vmatpush1.msra.mxu0 0.0
      %353 = vmatprep.subr.mxu0 0.0
      %354 = vmatpush1.msra.mxu0 0.0
      %355 = vmatprep.subr.mxu0 0.0
      %356 = vmatpush1.msra.mxu0 0.0
      %357 = vmatprep.subr.mxu0 0.0
      %358 = vmatpush1.msra.mxu0 0.0
      %359 = vmatprep.subr.mxu0 0.0
      %360 = vmatpush1.msra.mxu0 0.0
      %361 = vmatprep.subr.mxu0 0.0
      %362 = vmatpush1.msra.mxu0 0.0
      %363 = vmatprep.subr.mxu0 0.0
      %364 = vmatpush1.msra.mxu0 0.0
      %365 = vmatprep.subr.mxu0 0.0
      %366 = vmatpush1.msra.mxu0 0.0
      %367 = vmatprep.subr.mxu0 0.0
      %368 = vmatpush1.msra.mxu0 0.0
      %369 = vmatprep.subr.mxu0 0.0
      %370 = vmatpush1.msra.mxu0 0.0
      %371 = vmatprep.subr.mxu0 0.0
      %372 = vmatpush1.msra.mxu0 0.0
      %373 = vmatprep.subr.mxu0 0.0
      %374 = vmatpush1.msra.mxu0 0.0
      %375 = vmatprep.subr.mxu0 0.0
      %376 = vmatpush1.msra.mxu0 0.0
      %377 = vmatprep.subr.mxu0 0.0
      %378 = vmatpush1.msra.mxu0 0.0
      %379 = vmatprep.subr.mxu0 0.0
      %380 = vmatpush1.msra.mxu0 0.0
      %381 = vmatprep.subr.mxu0 0.0
      %382 = vmatpush1.msra.mxu0 0.0
      %383 = vmatprep.subr.mxu0 0.0
      %384 = vmatpush1.msra.mxu0 0.0
      %385 = vmatprep.subr.mxu0 0.0
      %386 = vmatpush1.msra.mxu0 0.0
      %387 = vmatprep.subr.mxu0 0.0
      %388 = vmatpush1.msra.mxu0 0.0
      %389 = vmatprep.subr.mxu0 0.0
      %390 = vmatpush1.msra.mxu0 0.0
      %391 = vmatprep.subr.mxu0 0.0
      %392 = vmatpush1.msra.mxu0 0.0
      %393 = vmatprep.subr.mxu0 0.0
      %394 = vmatpush1.msra.mxu0 0.0
      %395 = vmatprep.mubr.f32.mxu0 0.0
      %396 = vmatmul.mubr.f32.gmra.mrb[0].mxu0 %v320
      %v397 = vpop.f32.mrb[0].mxu0
      %v398 = vadd.f32 %v301, %v397
      %v399 = vpop.f32.mrb[0].mxu0
      %v400 = vadd.f32 %v305, %v399
      %401 = vmatprep.mubr.f32.mxu0 0.0
      %402 = vmatmul.mubr.f32.gmra.mrb[0].mxu0 %v323
      %v403 = vpop.f32.mrb[0].mxu0
      %v404 = vadd.f32 %v301, %v403
      %v405 = vpop.f32.mrb[0].mxu0
      %v406 = vadd.f32 %v305, %v405
      %407 = vmatprep.mubr.f32.mxu0 0.0
      %408 = vmatmul.mubr.f32.gmra.mrb[0].mxu0 %v326
      %v409 = vpop.f32.mrb[0].mxu0
      %v410 = vadd.f32 %v301, %v409
      %v411 = vpop.f32.mrb[0].mxu0
      %v412 = vadd.f32 %v305, %v411
      %413 = vmatprep.mubr.f32.mxu0 0.0
      %414 = vmatmul.mubr.f32.gmra.mrb[0].mxu0 %v329
      %v415 = vpop.f32.mrb[0].mxu0
      %v416 = vadd.f32 %v301, %v415
      %v417 = vpop.f32.mrb[0].mxu0
      %v418 = vadd.f32 %v305, %v417
      %419 = vdwg.mxu0
      %420 = vmatprep.subr.mxu0 %v291
      %421 = vmatpush1.msra.mxu0 %v290
      %422 = vmatprep.subr.mxu0 %v295
      %423 = vmatpush1.msra.mxu0 %v294
      %424 = vmatprep.subr.mxu0 0.0
      %425 = vmatpush1.msra.mxu0 0.0
      %426 = vmatprep.subr.mxu0 0.0
      %427 = vmatpush1.msra.mxu0 0.0
      %428 = vmatprep.subr.mxu0 0.0
      %429 = vmatpush1.msra.mxu0 0.0
      %430 = vmatprep.subr.mxu0 0.0
      %431 = vmatpush1.msra.mxu0 0.0
      %432 = vmatprep.subr.mxu0 0.0
      %433 = vmatpush1.msra.mxu0 0.0
      %434 = vmatprep.subr.mxu0 0.0
      %435 = vmatpush1.msra.mxu0 0.0
      %436 = vmatprep.subr.mxu0 0.0
      %437 = vmatpush1.msra.mxu0 0.0
      %438 = vmatprep.subr.mxu0 0.0
      %439 = vmatpush1.msra.mxu0 0.0
      %440 = vmatprep.subr.mxu0 0.0
      %441 = vmatpush1.msra.mxu0 0.0
      %442 = vmatprep.subr.mxu0 0.0
      %443 = vmatpush1.msra.mxu0 0.0
      %444 = vmatprep.subr.mxu0 0.0
      %445 = vmatpush1.msra.mxu0 0.0
      %446 = vmatprep.subr.mxu0 0.0
      %447 = vmatpush1.msra.mxu0 0.0
      %448 = vmatprep.subr.mxu0 0.0
      %449 = vmatpush1.msra.mxu0 0.0
      %450 = vmatprep.subr.mxu0 0.0
      %451 = vmatpush1.msra.mxu0 0.0
      %452 = vmatprep.subr.mxu0 0.0
      %453 = vmatpush1.msra.mxu0 0.0
      %454 = vmatprep.subr.mxu0 0.0
      %455 = vmatpush1.msra.mxu0 0.0
      %456 = vmatprep.subr.mxu0 0.0
      %457 = vmatpush1.msra.mxu0 0.0
      %458 = vmatprep.subr.mxu0 0.0
      %459 = vmatpush1.msra.mxu0 0.0
      %460 = vmatprep.subr.mxu0 0.0
      %461 = vmatpush1.msra.mxu0 0.0
      %462 = vmatprep.subr.mxu0 0.0
      %463 = vmatpush1.msra.mxu0 0.0
      %464 = vmatprep.subr.mxu0 0.0
      %465 = vmatpush1.msra.mxu0 0.0
      %466 = vmatprep.subr.mxu0 0.0
      %467 = vmatpush1.msra.mxu0 0.0
      %468 = vmatprep.subr.mxu0 0.0
      %469 = vmatpush1.msra.mxu0 0.0
      %470 = vmatprep.subr.mxu0 0.0
      %471 = vmatpush1.msra.mxu0 0.0
      %472 = vmatprep.subr.mxu0 0.0
      %473 = vmatpush1.msra.mxu0 0.0
      %474 = vmatprep.subr.mxu0 0.0
      %475 = vmatpush1.msra.mxu0 0.0
      %476 = vmatprep.subr.mxu0 0.0
      %477 = vmatpush1.msra.mxu0 0.0
      %478 = vmatprep.subr.mxu0 0.0
      %479 = vmatpush1.msra.mxu0 0.0
      %480 = vmatprep.subr.mxu0 0.0
      %481 = vmatpush1.msra.mxu0 0.0
      %482 = vmatprep.subr.mxu0 0.0
      %483 = vmatpush1.msra.mxu0 0.0
      %484 = vmatprep.mubr.f32.mxu0 0.0
      %485 = vmatmul.mubr.f32.gmra.mrb[0].mxu0 %v320
      %v486 = vpop.f32.mrb[0].mxu0
      %v487 = vadd.f32 %v309, %v486
      %v488 = vpop.f32.mrb[0].mxu0
      %v489 = vadd.f32 %v313, %v488
      %490 = vmatprep.mubr.f32.mxu0 0.0
      %491 = vmatmul.mubr.f32.gmra.mrb[0].mxu0 %v323
      %v492 = vpop.f32.mrb[0].mxu0
      %v493 = vadd.f32 %v309, %v492
      %v494 = vpop.f32.mrb[0].mxu0
      %v495 = vadd.f32 %v313, %v494
      %496 = vmatprep.mubr.f32.mxu0 0.0
      %497 = vmatmul.mubr.f32.gmra.mrb[0].mxu0 %v326
      %v498 = vpop.f32.mrb[0].mxu0
      %v499 = vadd.f32 %v309, %v498
      %v500 = vpop.f32.mrb[0].mxu0
      %v501 = vadd.f32 %v313, %v500
      %502 = vmatprep.mubr.f32.mxu0 0.0
      %503 = vmatmul.mubr.f32.gmra.mrb[0].mxu0 %v329
      %v504 = vpop.f32.mrb[0].mxu0
      %v505 = vadd.f32 %v309, %v504
      %v506 = vpop.f32.mrb[0].mxu0
      %v507 = vadd.f32 %v313, %v506
      %508 = vdwg.mxu0
      %509 = vst [vmem:[#allocation4] sm:$0xff] %v398
      %510 = vst [vmem:[#allocation4 + $0x8] sm:$0xff] %v400
      %511 = vst [vmem:[#allocation4 + $0x10] sm:$0xff] %v487
      %512 = vst [vmem:[#allocation4 + $0x18] sm:$0xff] %v489
      %513 = vst [vmem:[#allocation4 + $0x20] sm:$0xff] %v404
      %514 = vst [vmem:[#allocation4 + $0x28] sm:$0xff] %v406
      %515 = vst [vmem:[#allocation4 + $0x30] sm:$0xff] %v493
      %516 = vst [vmem:[#allocation4 + $0x38] sm:$0xff] %v495
      %517 = vst [vmem:[#allocation4 + $0x40] sm:$0xff] %v410
      %518 = vst [vmem:[#allocation4 + $0x48] sm:$0xff] %v412
      %519 = vst [vmem:[#allocation4 + $0x50] sm:$0xff] %v499
      %520 = vst [vmem:[#allocation4 + $0x58] sm:$0xff] %v501
      %521 = vst [vmem:[#allocation4 + $0x60] sm:$0xff] %v416
      %522 = vst [vmem:[#allocation4 + $0x68] sm:$0xff] %v418
      %523 = vst [vmem:[#allocation4 + $0x70] sm:$0xff] %v505
      %524 = vst [vmem:[#allocation4 + $0x78] sm:$0xff] %v507
      %v525 = vld [vmem:[#allocation2] sm:$0xff]
      %v526 = vld [vmem:[#allocation3] sm:$0xff]
      %s527 = smul.u32 0, 4
      %s528 = smul.addr %s527, 8
      %s529 = scalar_lea.vmem [#allocation4], %s528
      %v530 = vld [vmem:[%s529] sm:$0xff]
      %v531 = vld [vmem:[%s529 + $0x8] sm:$0xff]
      %v532 = vld [vmem:[%s529 + $0x10] sm:$0xff]
      %v533 = vld [vmem:[%s529 + $0x18] sm:$0xff]
      %v534 = vld [vmem:[%s2] sm:$0xff]
      %v535 = vld [vmem:[%s2 + $0x8] sm:$0xff]
      %v536 = vld [vmem:[%s2 + $0x10] sm:$0xff]
      %v537 = vld [vmem:[%s2 + $0x18] sm:$0xff]
      %v538 = vld [vmem:[%s2 + $0x20] sm:$0xff]
      %v539 = vld [vmem:[%s2 + $0x28] sm:$0xff]
      %v540 = vld [vmem:[%s2 + $0x30] sm:$0xff]
      %v541 = vld [vmem:[%s2 + $0x38] sm:$0xff]
      %v542 = vld [vmem:[%s2 + $0x40] sm:$0xff]
      %v543 = vld [vmem:[%s2 + $0x48] sm:$0xff]
      %v544 = vld [vmem:[%s2 + $0x50] sm:$0xff]
      %v545 = vld [vmem:[%s2 + $0x58] sm:$0xff]
      %v546 = vld [vmem:[%s2 + $0x60] sm:$0xff]
      %v547 = vld [vmem:[%s2 + $0x68] sm:$0xff]
      %v548 = vld [vmem:[%s2 + $0x70] sm:$0xff]
      %v549 = vld [vmem:[%s2 + $0x78] sm:$0xff]
      %v550 = vld [vmem:[%s2 + $0x80] sm:$0xff]
      %v551 = vld [vmem:[%s2 + $0x88] sm:$0xff]
      %v552 = vld [vmem:[%s2 + $0x90] sm:$0xff]
      %v553 = vld [vmem:[%s2 + $0x98] sm:$0xff]
      %v554 = vld [vmem:[%s2 + $0xa0] sm:$0xff]
      %v555 = vld [vmem:[%s2 + $0xa8] sm:$0xff]
      %v556 = vld [vmem:[%s2 + $0xb0] sm:$0xff]
      %v557 = vld [vmem:[%s2 + $0xb8] sm:$0xff]
      %v558 = vld [vmem:[%s2 + $0xc0] sm:$0xff]
      %v559 = vld [vmem:[%s2 + $0xc8] sm:$0xff]
      %v560 = vld [vmem:[%s2 + $0xd0] sm:$0xff]
      %v561 = vld [vmem:[%s2 + $0xd8] sm:$0xff]
      %v562 = vld [vmem:[%s2 + $0xe0] sm:$0xff]
      %v563 = vld [vmem:[%s2 + $0xe8] sm:$0xff]
      %v564 = vld [vmem:[%s2 + $0xf0] sm:$0xff]
      %v565 = vld [vmem:[%s2 + $0xf8] sm:$0xff]
      %v566 = vld [vmem:[%s2 + $0x100] sm:$0xff]
      %v567 = vld [vmem:[%s2 + $0x108] sm:$0xff]
      %v568 = vld [vmem:[%s2 + $0x110] sm:$0xff]
      %v569 = vld [vmem:[%s2 + $0x118] sm:$0xff]
      %v570 = vld [vmem:[%s2 + $0x120] sm:$0xff]
      %v571 = vld [vmem:[%s2 + $0x128] sm:$0xff]
      %v572 = vld [vmem:[%s2 + $0x130] sm:$0xff]
      %v573 = vld [vmem:[%s2 + $0x138] sm:$0xff]
      %v574 = vld [vmem:[%s2 + $0x140] sm:$0xff]
      %v575 = vld [vmem:[%s2 + $0x148] sm:$0xff]
      %v576 = vld [vmem:[%s2 + $0x150] sm:$0xff]
      %v577 = vld [vmem:[%s2 + $0x158] sm:$0xff]
      %v578 = vld [vmem:[%s2 + $0x160] sm:$0xff]
      %v579 = vld [vmem:[%s2 + $0x168] sm:$0xff]
      %v580 = vld [vmem:[%s2 + $0x170] sm:$0xff]
      %v581 = vld [vmem:[%s2 + $0x178] sm:$0xff]
      %v582 = vld [vmem:[%s2 + $0x180] sm:$0xff]
      %v583 = vld [vmem:[%s2 + $0x188] sm:$0xff]
      %v584 = vld [vmem:[%s2 + $0x190] sm:$0xff]
      %v585 = vld [vmem:[%s2 + $0x198] sm:$0xff]
      %v586 = vld [vmem:[%s2 + $0x1a0] sm:$0xff]
      %v587 = vld [vmem:[%s2 + $0x1a8] sm:$0xff]
      %v588 = vld [vmem:[%s2 + $0x1b0] sm:$0xff]
      %v589 = vld [vmem:[%s2 + $0x1b8] sm:$0xff]
      %v590 = vld [vmem:[%s2 + $0x1c0] sm:$0xff]
      %v591 = vld [vmem:[%s2 + $0x1c8] sm:$0xff]
      %v592 = vld [vmem:[%s2 + $0x1d0] sm:$0xff]
      %v593 = vld [vmem:[%s2 + $0x1d8] sm:$0xff]
      %v594 = vld [vmem:[%s2 + $0x1e0] sm:$0xff]
      %v595 = vld [vmem:[%s2 + $0x1e8] sm:$0xff]
      %v596 = vld [vmem:[%s2 + $0x1f0] sm:$0xff]
      %v597 = vld [vmem:[%s2 + $0x1f8] sm:$0xff]
      %598 = vmatprep.subr.mxu0 %v535
      %599 = vmatpush1.msra.mxu0 %v534
      %600 = vmatprep.subr.mxu0 %v539
      %601 = vmatpush1.msra.mxu0 %v538
      %602 = vmatprep.subr.mxu0 %v543
      %603 = vmatpush1.msra.mxu0 %v542
      %604 = vmatprep.subr.mxu0 %v547
      %605 = vmatpush1.msra.mxu0 %v546
      %606 = vmatprep.subr.mxu0 %v551
      %607 = vmatpush1.msra.mxu0 %v550
      %608 = vmatprep.subr.mxu0 %v555
      %609 = vmatpush1.msra.mxu0 %v554
      %610 = vmatprep.subr.mxu0 %v559
      %611 = vmatpush1.msra.mxu0 %v558
      %612 = vmatprep.subr.mxu0 %v563
      %613 = vmatpush1.msra.mxu0 %v562
      %614 = vmatprep.subr.mxu0 %v567
      %615 = vmatpush1.msra.mxu0 %v566
      %616 = vmatprep.subr.mxu0 %v571
      %617 = vmatpush1.msra.mxu0 %v570
      %618 = vmatprep.subr.mxu0 %v575
      %619 = vmatpush1.msra.mxu0 %v574
      %620 = vmatprep.subr.mxu0 %v579
      %621 = vmatpush1.msra.mxu0 %v578
      %622 = vmatprep.subr.mxu0 %v583
      %623 = vmatpush1.msra.mxu0 %v582
      %624 = vmatprep.subr.mxu0 %v587
      %625 = vmatpush1.msra.mxu0 %v586
      %626 = vmatprep.subr.mxu0 %v591
      %627 = vmatpush1.msra.mxu0 %v590
      %628 = vmatprep.subr.mxu0 %v595
      %629 = vmatpush1.msra.mxu0 %v594
      %630 = vmatprep.subr.mxu0 0.0
      %631 = vmatpush1.msra.mxu0 0.0
      %632 = vmatprep.subr.mxu0 0.0
      %633 = vmatpush1.msra.mxu0 0.0
      %634 = vmatprep.subr.mxu0 0.0
      %635 = vmatpush1.msra.mxu0 0.0
      %636 = vmatprep.subr.mxu0 0.0
      %637 = vmatpush1.msra.mxu0 0.0
      %638 = vmatprep.subr.mxu0 0.0
      %639 = vmatpush1.msra.mxu0 0.0
      %640 = vmatprep.subr.mxu0 0.0
      %641 = vmatpush1.msra.mxu0 0.0
      %642 = vmatprep.subr.mxu0 0.0
      %643 = vmatpush1.msra.mxu0 0.0
      %644 = vmatprep.subr.mxu0 0.0
      %645 = vmatpush1.msra.mxu0 0.0
      %646 = vmatprep.subr.mxu0 0.0
      %647 = vmatpush1.msra.mxu0 0.0
      %648 = vmatprep.subr.mxu0 0.0
      %649 = vmatpush1.msra.mxu0 0.0
      %650 = vmatprep.subr.mxu0 0.0
      %651 = vmatpush1.msra.mxu0 0.0
      %652 = vmatprep.subr.mxu0 0.0
      %653 = vmatpush1.msra.mxu0 0.0
      %654 = vmatprep.subr.mxu0 0.0
      %655 = vmatpush1.msra.mxu0 0.0
      %656 = vmatprep.subr.mxu0 0.0
      %657 = vmatpush1.msra.mxu0 0.0
      %658 = vmatprep.subr.mxu0 0.0
      %659 = vmatpush1.msra.mxu0 0.0
      %660 = vmatprep.subr.mxu0 0.0
      %661 = vmatpush1.msra.mxu0 0.0
      %662 = vmatprep.mubr.f32.mxu0 0.0
      %663 = vmatmul.mubr.f32.gmra.mrb[0].mxu0 %v525
      %v664 = vpop.f32.mrb[0].mxu0
      %v665 = vadd.f32 0.0, %v664
      %v666 = vpop.f32.mrb[0].mxu0
      %v667 = vadd.f32 0.0, %v666
      %668 = vdwg.mxu0
      %669 = vmatprep.subr.mxu0 %v537
      %670 = vmatpush1.msra.mxu0 %v536
      %671 = vmatprep.subr.mxu0 %v541
      %672 = vmatpush1.msra.mxu0 %v540
      %673 = vmatprep.subr.mxu0 %v545
      %674 = vmatpush1.msra.mxu0 %v544
      %675 = vmatprep.subr.mxu0 %v549
      %676 = vmatpush1.msra.mxu0 %v548
      %677 = vmatprep.subr.mxu0 %v553
      %678 = vmatpush1.msra.mxu0 %v552
      %679 = vmatprep.subr.mxu0 %v557
      %680 = vmatpush1.msra.mxu0 %v556
      %681 = vmatprep.subr.mxu0 %v561
      %682 = vmatpush1.msra.mxu0 %v560
      %683 = vmatprep.subr.mxu0 %v565
      %684 = vmatpush1.msra.mxu0 %v564
      %685 = vmatprep.subr.mxu0 %v569
      %686 = vmatpush1.msra.mxu0 %v568
      %687 = vmatprep.subr.mxu0 %v573
      %688 = vmatpush1.msra.mxu0 %v572
      %689 = vmatprep.subr.mxu0 %v577
      %690 = vmatpush1.msra.mxu0 %v576
      %691 = vmatprep.subr.mxu0 %v581
      %692 = vmatpush1.msra.mxu0 %v580
      %693 = vmatprep.subr.mxu0 %v585
      %694 = vmatpush1.msra.mxu0 %v584
      %695 = vmatprep.subr.mxu0 %v589
      %696 = vmatpush1.msra.mxu0 %v588
      %697 = vmatprep.subr.mxu0 %v593
      %698 = vmatpush1.msra.mxu0 %v592
      %699 = vmatprep.subr.mxu0 %v597
      %700 = vmatpush1.msra.mxu0 %v596
      %701 = vmatprep.subr.mxu0 0.0
      %702 = vmatpush1.msra.mxu0 0.0
      %703 = vmatprep.subr.mxu0 0.0
      %704 = vmatpush1.msra.mxu0 0.0
      %705 = vmatprep.subr.mxu0 0.0
      %706 = vmatpush1.msra.mxu0 0.0
      %707 = vmatprep.subr.mxu0 0.0
      %708 = vmatpush1.msra.mxu0 0.0
      %709 = vmatprep.subr.mxu0 0.0
      %710 = vmatpush1.msra.mxu0 0.0
      %711 = vmatprep.subr.mxu0 0.0
      %712 = vmatpush1.msra.mxu0 0.0
      %713 = vmatprep.subr.mxu0 0.0
      %714 = vmatpush1.msra.mxu0 0.0
      %715 = vmatprep.subr.mxu0 0.0
      %716 = vmatpush1.msra.mxu0 0.0
      %717 = vmatprep.subr.mxu0 0.0
      %718 = vmatpush1.msra.mxu0 0.0
      %719 = vmatprep.subr.mxu0 0.0
      %720 = vmatpush1.msra.mxu0 0.0
      %721 = vmatprep.subr.mxu0 0.0
      %722 = vmatpush1.msra.mxu0 0.0
      %723 = vmatprep.subr.mxu0 0.0
      %724 = vmatpush1.msra.mxu0 0.0
      %725 = vmatprep.subr.mxu0 0.0
      %726 = vmatpush1.msra.mxu0 0.0
      %727 = vmatprep.subr.mxu0 0.0
      %728 = vmatpush1.msra.mxu0 0.0
      %729 = vmatprep.subr.mxu0 0.0
      %730 = vmatpush1.msra.mxu0 0.0
      %731 = vmatprep.subr.mxu0 0.0
      %732 = vmatpush1.msra.mxu0 0.0
      %733 = vmatprep.mubr.f32.mxu0 0.0
      %734 = vmatmul.mubr.f32.gmra.mrb[0].mxu0 %v525
      %v735 = vpop.f32.mrb[0].mxu0
      %v736 = vadd.f32 0.0, %v735
      %v737 = vpop.f32.mrb[0].mxu0
      %v738 = vadd.f32 0.0, %v737
      %739 = vdwg.mxu0
      %v740 = vadd.f32 %v530, %v665
      %v741 = vadd.f32 %v531, %v667
      %v742 = vadd.f32 %v532, %v736
      %v743 = vadd.f32 %v533, %v738
      %v744 = vxor.u32 %v740, 2147483648
      %v745 = vmul.f32 %v744, 1.442695
      %v746 = vpow.pop %v745
      %v747 = vadd.f32 %v746, 1.0
      %v748 = vrcp.pop %v747
      %v749 = vmul.f32 1.0, %v748
      %v750 = vxor.u32 %v741, 2147483648
      %v751 = vmul.f32 %v750, 1.442695
      %v752 = vpow.pop %v751
      %v753 = vadd.f32 %v752, 1.0
      %v754 = vrcp.pop %v753
      %v755 = vmul.f32 1.0, %v754
      %v756 = vtanh.pop %v742
      %v757 = vxor.u32 %v743, 2147483648
      %v758 = vmul.f32 %v757, 1.442695
      %v759 = vpow.pop %v758
      %v760 = vadd.f32 %v759, 1.0
      %v761 = vrcp.pop %v760
      %v762 = vmul.f32 1.0, %v761
      %v763 = vmul.f32 %v755, %v526
      %v764 = vmul.f32 %v749, %v756
      %v765 = vadd.f32 %v763, %v764
      %v766 = vtanh.pop %v765
      %v767 = vmul.f32 %v762, %v766
      %s768 = smul.u32 1, 4
      %s769 = smul.addr %s768, 8
      %s770 = scalar_lea.vmem [#allocation4], %s769
      %v771 = vld [vmem:[%s770] sm:$0xff]
      %v772 = vld [vmem:[%s770 + $0x8] sm:$0xff]
      %v773 = vld [vmem:[%s770 + $0x10] sm:$0xff]
      %v774 = vld [vmem:[%s770 + $0x18] sm:$0xff]
      %775 = vmatprep.subr.mxu0 %v535
      %776 = vmatpush1.msra.mxu0 %v534
      %777 = vmatprep.subr.mxu0 %v539
      %778 = vmatpush1.msra.mxu0 %v538
      %779 = vmatprep.subr.mxu0 %v543
      %780 = vmatpush1.msra.mxu0 %v542
      %781 = vmatprep.subr.mxu0 %v547
      %782 = vmatpush1.msra.mxu0 %v546
      %783 = vmatprep.subr.mxu0 %v551
      %784 = vmatpush1.msra.mxu0 %v550
      %785 = vmatprep.subr.mxu0 %v555
      %786 = vmatpush1.msra.mxu0 %v554
      %787 = vmatprep.subr.mxu0 %v559
      %788 = vmatpush1.msra.mxu0 %v558
      %789 = vmatprep.subr.mxu0 %v563
      %790 = vmatpush1.msra.mxu0 %v562
      %791 = vmatprep.subr.mxu0 %v567
      %792 = vmatpush1.msra.mxu0 %v566
      %793 = vmatprep.subr.mxu0 %v571
      %794 = vmatpush1.msra.mxu0 %v570
      %795 = vmatprep.subr.mxu0 %v575
      %796 = vmatpush1.msra.mxu0 %v574
      %797 = vmatprep.subr.mxu0 %v579
      %798 = vmatpush1.msra.mxu0 %v578
      %799 = vmatprep.subr.mxu0 %v583
      %800 = vmatpush1.msra.mxu0 %v582
      %801 = vmatprep.subr.mxu0 %v587
      %802 = vmatpush1.msra.mxu0 %v586
      %803 = vmatprep.subr.mxu0 %v591
      %804 = vmatpush1.msra.mxu0 %v590
      %805 = vmatprep.subr.mxu0 %v595
      %806 = vmatpush1.msra.mxu0 %v594
      %807 = vmatprep.subr.mxu0 0.0
      %808 = vmatpush1.msra.mxu0 0.0
      %809 = vmatprep.subr.mxu0 0.0
      %810 = vmatpush1.msra.mxu0 0.0
      %811 = vmatprep.subr.mxu0 0.0
      %812 = vmatpush1.msra.mxu0 0.0
      %813 = vmatprep.subr.mxu0 0.0
      %814 = vmatpush1.msra.mxu0 0.0
      %815 = vmatprep.subr.mxu0 0.0
      %816 = vmatpush1.msra.mxu0 0.0
      %817 = vmatprep.subr.mxu0 0.0
      %818 = vmatpush1.msra.mxu0 0.0
      %819 = vmatprep.subr.mxu0 0.0
      %820 = vmatpush1.msra.mxu0 0.0
      %821 = vmatprep.subr.mxu0 0.0
      %822 = vmatpush1.msra.mxu0 0.0
      %823 = vmatprep.subr.mxu0 0.0
      %824 = vmatpush1.msra.mxu0 0.0
      %825 = vmatprep.subr.mxu0 0.0
      %826 = vmatpush1.msra.mxu0 0.0
      %827 = vmatprep.subr.mxu0 0.0
      %828 = vmatpush1.msra.mxu0 0.0
      %829 = vmatprep.subr.mxu0 0.0
      %830 = vmatpush1.msra.mxu0 0.0
      %831 = vmatprep.subr.mxu0 0.0
      %832 = vmatpush1.msra.mxu0 0.0
      %833 = vmatprep.subr.mxu0 0.0
      %834 = vmatpush1.msra.mxu0 0.0
      %835 = vmatprep.subr.mxu0 0.0
      %836 = vmatpush1.msra.mxu0 0.0
      %837 = vmatprep.subr.mxu0 0.0
      %838 = vmatpush1.msra.mxu0 0.0
      %839 = vmatprep.mubr.f32.mxu0 0.0
      %840 = vmatmul.mubr.f32.gmra.mrb[0].mxu0 %v767
      %v841 = vpop.f32.mrb[0].mxu0
      %v842 = vadd.f32 0.0, %v841
      %v843 = vpop.f32.mrb[0].mxu0
      %v844 = vadd.f32 0.0, %v843
      %845 = vdwg.mxu0
      %846 = vmatprep.subr.mxu0 %v537
      %847 = vmatpush1.msra.mxu0 %v536
      %848 = vmatprep.subr.mxu0 %v541
      %849 = vmatpush1.msra.mxu0 %v540
      %850 = vmatprep.subr.mxu0 %v545
      %851 = vmatpush1.msra.mxu0 %v544
      %852 = vmatprep.subr.mxu0 %v549
      %853 = vmatpush1.msra.mxu0 %v548
      %854 = vmatprep.subr.mxu0 %v553
      %855 = vmatpush1.msra.mxu0 %v552
      %856 = vmatprep.subr.mxu0 %v557
      %857 = vmatpush1.msra.mxu0 %v556
      %858 = vmatprep.subr.mxu0 %v561
      %859 = vmatpush1.msra.mxu0 %v560
      %860 = vmatprep.subr.mxu0 %v565
      %861 = vmatpush1.msra.mxu0 %v564
      %862 = vmatprep.subr.mxu0 %v569
      %863 = vmatpush1.msra.mxu0 %v568
      %864 = vmatprep.subr.mxu0 %v573
      %865 = vmatpush1.msra.mxu0 %v572
      %866 = vmatprep.subr.mxu0 %v577
      %867 = vmatpush1.msra.mxu0 %v576
      %868 = vmatprep.subr.mxu0 %v581
      %869 = vmatpush1.msra.mxu0 %v580
      %870 = vmatprep.subr.mxu0 %v585
      %871 = vmatpush1.msra.mxu0 %v584
      %872 = vmatprep.subr.mxu0 %v589
      %873 = vmatpush1.msra.mxu0 %v588
      %874 = vmatprep.subr.mxu0 %v593
      %875 = vmatpush1.msra.mxu0 %v592
      %876 = vmatprep.subr.mxu0 %v597
      %877 = vmatpush1.msra.mxu0 %v596
      %878 = vmatprep.subr.mxu0 0.0
      %879 = vmatpush1.msra.mxu0 0.0
      %880 = vmatprep.subr.mxu0 0.0
      %881 = vmatpush1.msra.mxu0 0.0
      %882 = vmatprep.subr.mxu0 0.0
      %883 = vmatpush1.msra.mxu0 0.0
      %884 = vmatprep.subr.mxu0 0.0
      %885 = vmatpush1.msra.mxu0 0.0
      %886 = vmatprep.subr.mxu0 0.0
      %887 = vmatpush1.msra.mxu0 0.0
      %888 = vmatprep.subr.mxu0 0.0
      %889 = vmatpush1.msra.mxu0 0.0
      %890 = vmatprep.subr.mxu0 0.0
      %891 = vmatpush1.msra.mxu0 0.0
      %892 = vmatprep.subr.mxu0 0.0
      %893 = vmatpush1.msra.mxu0 0.0
      %894 = vmatprep.subr.mxu0 0.0
      %895 = vmatpush1.msra.mxu0 0.0
      %896 = vmatprep.subr.mxu0 0.0
      %897 = vmatpush1.msra.mxu0 0.0
      %898 = vmatprep.subr.mxu0 0.0
      %899 = vmatpush1.msra.mxu0 0.0
      %900 = vmatprep.subr.mxu0 0.0
      %901 = vmatpush1.msra.mxu0 0.0
      %902 = vmatprep.subr.mxu0 0.0
      %903 = vmatpush1.msra.mxu0 0.0
      %904 = vmatprep.subr.mxu0 0.0
      %905 = vmatpush1.msra.mxu0 0.0
      %906 = vmatprep.subr.mxu0 0.0
      %907 = vmatpush1.msra.mxu0 0.0
      %908 = vmatprep.subr.mxu0 0.0
      %909 = vmatpush1.msra.mxu0 0.0
      %910 = vmatprep.mubr.f32.mxu0 0.0
      %911 = vmatmul.mubr.f32.gmra.mrb[0].mxu0 %v767
      %v912 = vpop.f32.mrb[0].mxu0
      %v913 = vadd.f32 0.0, %v912
      %v914 = vpop.f32.mrb[0].mxu0
      %v915 = vadd.f32 0.0, %v914
      %916 = vdwg.mxu0
      %v917 = vadd.f32 %v771, %v842
      %v918 = vadd.f32 %v772, %v844
      %v919 = vadd.f32 %v773, %v913
      %v920 = vadd.f32 %v774, %v915
      %v921 = vxor.u32 %v917, 2147483648
      %v922 = vmul.f32 %v921, 1.442695
      %v923 = vpow.pop %v922
      %v924 = vadd.f32 %v923, 1.0
      %v925 = vrcp.pop %v924
      %v926 = vmul.f32 1.0, %v925
      %v927 = vxor.u32 %v918, 2147483648
      %v928 = vmul.f32 %v927, 1.442695
      %v929 = vpow.pop %v928
      %v930 = vadd.f32 %v929, 1.0
      %v931 = vrcp.pop %v930
      %v932 = vmul.f32 1.0, %v931
      %v933 = vtanh.pop %v919
      %v934 = vxor.u32 %v920, 2147483648
      %v935 = vmul.f32 %v934, 1.442695
      %v936 = vpow.pop %v935
      %v937 = vadd.f32 %v936, 1.0
      %v938 = vrcp.pop %v937
      %v939 = vmul.f32 1.0, %v938
      %v940 = vmul.f32 %v932, %v765
      %v941 = vmul.f32 %v926, %v933
      %v942 = vadd.f32 %v940, %v941
      %v943 = vtanh.pop %v942
      %v944 = vmul.f32 %v939, %v943
      %s945 = smul.u32 2, 4
      %s946 = smul.addr %s945, 8
      %s947 = scalar_lea.vmem [#allocation4], %s946
      %v948 = vld [vmem:[%s947] sm:$0xff]
      %v949 = vld [vmem:[%s947 + $0x8] sm:$0xff]
      %v950 = vld [vmem:[%s947 + $0x10] sm:$0xff]
      %v951 = vld [vmem:[%s947 + $0x18] sm:$0xff]
      %952 = vmatprep.subr.mxu0 %v535
      %953 = vmatpush1.msra.mxu0 %v534
      %954 = vmatprep.subr.mxu0 %v539
      %955 = vmatpush1.msra.mxu0 %v538
      %956 = vmatprep.subr.mxu0 %v543
      %957 = vmatpush1.msra.mxu0 %v542
      %958 = vmatprep.subr.mxu0 %v547
      %959 = vmatpush1.msra.mxu0 %v546
      %960 = vmatprep.subr.mxu0 %v551
      %961 = vmatpush1.msra.mxu0 %v550
      %962 = vmatprep.subr.mxu0 %v555
      %963 = vmatpush1.msra.mxu0 %v554
      %964 = vmatprep.subr.mxu0 %v559
      %965 = vmatpush1.msra.mxu0 %v558
      %966 = vmatprep.subr.mxu0 %v563
      %967 = vmatpush1.msra.mxu0 %v562
      %968 = vmatprep.subr.mxu0 %v567
      %969 = vmatpush1.msra.mxu0 %v566
      %970 = vmatprep.subr.mxu0 %v571
      %971 = vmatpush1.msra.mxu0 %v570
      %972 = vmatprep.subr.mxu0 %v575
      %973 = vmatpush1.msra.mxu0 %v574
      %974 = vmatprep.subr.mxu0 %v579
      %975 = vmatpush1.msra.mxu0 %v578
      %976 = vmatprep.subr.mxu0 %v583
      %977 = vmatpush1.msra.mxu0 %v582
      %978 = vmatprep.subr.mxu0 %v587
      %979 = vmatpush1.msra.mxu0 %v586
      %980 = vmatprep.subr.mxu0 %v591
      %981 = vmatpush1.msra.mxu0 %v590
      %982 = vmatprep.subr.mxu0 %v595
      %983 = vmatpush1.msra.mxu0 %v594
      %984 = vmatprep.subr.mxu0 0.0
      %985 = vmatpush1.msra.mxu0 0.0
      %986 = vmatprep.subr.mxu0 0.0
      %987 = vmatpush1.msra.mxu0 0.0
      %988 = vmatprep.subr.mxu0 0.0
      %989 = vmatpush1.msra.mxu0 0.0
      %990 = vmatprep.subr.mxu0 0.0
      %991 = vmatpush1.msra.mxu0 0.0
      %992 = vmatprep.subr.mxu0 0.0
      %993 = vmatpush1.msra.mxu0 0.0
      %994 = vmatprep.subr.mxu0 0.0
      %995 = vmatpush1.msra.mxu0 0.0
      %996 = vmatprep.subr.mxu0 0.0
      %997 = vmatpush1.msra.mxu0 0.0
      %998 = vmatprep.subr.mxu0 0.0
      %999 = vmatpush1.msra.mxu0 0.0
      %1000 = vmatprep.subr.mxu0 0.0
      %1001 = vmatpush1.msra.mxu0 0.0
      %1002 = vmatprep.subr.mxu0 0.0
      %1003 = vmatpush1.msra.mxu0 0.0
      %1004 = vmatprep.subr.mxu0 0.0
      %1005 = vmatpush1.msra.mxu0 0.0
      %1006 = vmatprep.subr.mxu0 0.0
      %1007 = vmatpush1.msra.mxu0 0.0
      %1008 = vmatprep.subr.mxu0 0.0
      %1009 = vmatpush1.msra.mxu0 0.0
      %1010 = vmatprep.subr.mxu0 0.0
      %1011 = vmatpush1.msra.mxu0 0.0
      %1012 = vmatprep.subr.mxu0 0.0
      %1013 = vmatpush1.msra.mxu0 0.0
      %1014 = vmatprep.subr.mxu0 0.0
      %1015 = vmatpush1.msra.mxu0 0.0
      %1016 = vmatprep.mubr.f32.mxu0 0.0
      %1017 = vmatmul.mubr.f32.gmra.mrb[0].mxu0 %v944
      %v1018 = vpop.f32.mrb[0].mxu0
      %v1019 = vadd.f32 0.0, %v1018
      %v1020 = vpop.f32.mrb[0].mxu0
      %v1021 = vadd.f32 0.0, %v1020
      %1022 = vdwg.mxu0
      %1023 = vmatprep.subr.mxu0 %v537
      %1024 = vmatpush1.msra.mxu0 %v536
      %1025 = vmatprep.subr.mxu0 %v541
      %1026 = vmatpush1.msra.mxu0 %v540
      %1027 = vmatprep.subr.mxu0 %v545
      %1028 = vmatpush1.msra.mxu0 %v544
      %1029 = vmatprep.subr.mxu0 %v549
      %1030 = vmatpush1.msra.mxu0 %v548
      %1031 = vmatprep.subr.mxu0 %v553
      %1032 = vmatpush1.msra.mxu0 %v552
      %1033 = vmatprep.subr.mxu0 %v557
      %1034 = vmatpush1.msra.mxu0 %v556
      %1035 = vmatprep.subr.mxu0 %v561
      %1036 = vmatpush1.msra.mxu0 %v560
      %1037 = vmatprep.subr.mxu0 %v565
      %1038 = vmatpush1.msra.mxu0 %v564
      %1039 = vmatprep.subr.mxu0 %v569
      %1040 = vmatpush1.msra.mxu0 %v568
      %1041 = vmatprep.subr.mxu0 %v573
      %1042 = vmatpush1.msra.mxu0 %v572
      %1043 = vmatprep.subr.mxu0 %v577
      %1044 = vmatpush1.msra.mxu0 %v576
      %1045 = vmatprep.subr.mxu0 %v581
      %1046 = vmatpush1.msra.mxu0 %v580
      %1047 = vmatprep.subr.mxu0 %v585
      %1048 = vmatpush1.msra.mxu0 %v584
      %1049 = vmatprep.subr.mxu0 %v589
      %1050 = vmatpush1.msra.mxu0 %v588
      %1051 = vmatprep.subr.mxu0 %v593
      %1052 = vmatpush1.msra.mxu0 %v592
      %1053 = vmatprep.subr.mxu0 %v597
      %1054 = vmatpush1.msra.mxu0 %v596
      %1055 = vmatprep.subr.mxu0 0.0
      %1056 = vmatpush1.msra.mxu0 0.0
      %1057 = vmatprep.subr.mxu0 0.0
      %1058 = vmatpush1.msra.mxu0 0.0
      %1059 = vmatprep.subr.mxu0 0.0
      %1060 = vmatpush1.msra.mxu0 0.0
      %1061 = vmatprep.subr.mxu0 0.0
      %1062 = vmatpush1.msra.mxu0 0.0
      %1063 = vmatprep.subr.mxu0 0.0
      %1064 = vmatpush1.msra.mxu0 0.0
      %1065 = vmatprep.subr.mxu0 0.0
      %1066 = vmatpush1.msra.mxu0 0.0
      %1067 = vmatprep.subr.mxu0 0.0
      %1068 = vmatpush1.msra.mxu0 0.0
      %1069 = vmatprep.subr.mxu0 0.0
      %1070 = vmatpush1.msra.mxu0 0.0
      %1071 = vmatprep.subr.mxu0 0.0
      %1072 = vmatpush1.msra.mxu0 0.0
      %1073 = vmatprep.subr.mxu0 0.0
      %1074 = vmatpush1.msra.mxu0 0.0
      %1075 = vmatprep.subr.mxu0 0.0
      %1076 = vmatpush1.msra.mxu0 0.0
      %1077 = vmatprep.subr.mxu0 0.0
      %1078 = vmatpush1.msra.mxu0 0.0
      %1079 = vmatprep.subr.mxu0 0.0
      %1080 = vmatpush1.msra.mxu0 0.0
      %1081 = vmatprep.subr.mxu0 0.0
      %1082 = vmatpush1.msra.mxu0 0.0
      %1083 = vmatprep.subr.mxu0 0.0
      %1084 = vmatpush1.msra.mxu0 0.0
      %1085 = vmatprep.subr.mxu0 0.0
      %1086 = vmatpush1.msra.mxu0 0.0
      %1087 = vmatprep.mubr.f32.mxu0 0.0
      %1088 = vmatmul.mubr.f32.gmra.mrb[0].mxu0 %v944
      %v1089 = vpop.f32.mrb[0].mxu0
      %v1090 = vadd.f32 0.0, %v1089
      %v1091 = vpop.f32.mrb[0].mxu0
      %v1092 = vadd.f32 0.0, %v1091
      %1093 = vdwg.mxu0
      %v1094 = vadd.f32 %v948, %v1019
      %v1095 = vadd.f32 %v949, %v1021
      %v1096 = vadd.f32 %v950, %v1090
      %v1097 = vadd.f32 %v951, %v1092
      %v1098 = vxor.u32 %v1094, 2147483648
      %v1099 = vmul.f32 %v1098, 1.442695
      %v1100 = vpow.pop %v1099
      %v1101 = vadd.f32 %v1100, 1.0
      %v1102 = vrcp.pop %v1101
      %v1103 = vmul.f32 1.0, %v1102
      %v1104 = vxor.u32 %v1095, 2147483648
      %v1105 = vmul.f32 %v1104, 1.442695
      %v1106 = vpow.pop %v1105
      %v1107 = vadd.f32 %v1106, 1.0
      %v1108 = vrcp.pop %v1107
      %v1109 = vmul.f32 1.0, %v1108
      %v1110 = vtanh.pop %v1096
      %v1111 = vxor.u32 %v1097, 2147483648
      %v1112 = vmul.f32 %v1111, 1.442695
      %v1113 = vpow.pop %v1112
      %v1114 = vadd.f32 %v1113, 1.0
      %v1115 = vrcp.pop %v1114
      %v1116 = vmul.f32 1.0, %v1115
      %v1117 = vmul.f32 %v1109, %v942
      %v1118 = vmul.f32 %v1103, %v1110
      %v1119 = vadd.f32 %v1117, %v1118
      %v1120 = vtanh.pop %v1119
      %v1121 = vmul.f32 %v1116, %v1120
      %s1122 = smul.u32 3, 4
      %s1123 = smul.addr %s1122, 8
      %s1124 = scalar_lea.vmem [#allocation4], %s1123
      %v1125 = vld [vmem:[%s1124] sm:$0xff]
      %v1126 = vld [vmem:[%s1124 + $0x8] sm:$0xff]
      %v1127 = vld [vmem:[%s1124 + $0x10] sm:$0xff]
      %v1128 = vld [vmem:[%s1124 + $0x18] sm:$0xff]
      %1129 = vmatprep.subr.mxu0 %v535
      %1130 = vmatpush1.msra.mxu0 %v534
      %1131 = vmatprep.subr.mxu0 %v539
      %1132 = vmatpush1.msra.mxu0 %v538
      %1133 = vmatprep.subr.mxu0 %v543
      %1134 = vmatpush1.msra.mxu0 %v542
      %1135 = vmatprep.subr.mxu0 %v547
      %1136 = vmatpush1.msra.mxu0 %v546
      %1137 = vmatprep.subr.mxu0 %v551
      %1138 = vmatpush1.msra.mxu0 %v550
      %1139 = vmatprep.subr.mxu0 %v555
      %1140 = vmatpush1.msra.mxu0 %v554
      %1141 = vmatprep.subr.mxu0 %v559
      %1142 = vmatpush1.msra.mxu0 %v558
      %1143 = vmatprep.subr.mxu0 %v563
      %1144 = vmatpush1.msra.mxu0 %v562
      %1145 = vmatprep.subr.mxu0 %v567
      %1146 = vmatpush1.msra.mxu0 %v566
      %1147 = vmatprep.subr.mxu0 %v571
      %1148 = vmatpush1.msra.mxu0 %v570
      %1149 = vmatprep.subr.mxu0 %v575
      %1150 = vmatpush1.msra.mxu0 %v574
      %1151 = vmatprep.subr.mxu0 %v579
      %1152 = vmatpush1.msra.mxu0 %v578
      %1153 = vmatprep.subr.mxu0 %v583
      %1154 = vmatpush1.msra.mxu0 %v582
      %1155 = vmatprep.subr.mxu0 %v587
      %1156 = vmatpush1.msra.mxu0 %v586
      %1157 = vmatprep.subr.mxu0 %v591
      %1158 = vmatpush1.msra.mxu0 %v590
      %1159 = vmatprep.subr.mxu0 %v595
      %1160 = vmatpush1.msra.mxu0 %v594
      %1161 = vmatprep.subr.mxu0 0.0
      %1162 = vmatpush1.msra.mxu0 0.0
      %1163 = vmatprep.subr.mxu0 0.0
      %1164 = vmatpush1.msra.mxu0 0.0
      %1165 = vmatprep.subr.mxu0 0.0
      %1166 = vmatpush1.msra.mxu0 0.0
      %1167 = vmatprep.subr.mxu0 0.0
      %1168 = vmatpush1.msra.mxu0 0.0
      %1169 = vmatprep.subr.mxu0 0.0
      %1170 = vmatpush1.msra.mxu0 0.0
      %1171 = vmatprep.subr.mxu0 0.0
      %1172 = vmatpush1.msra.mxu0 0.0
      %1173 = vmatprep.subr.mxu0 0.0
      %1174 = vmatpush1.msra.mxu0 0.0
      %1175 = vmatprep.subr.mxu0 0.0
      %1176 = vmatpush1.msra.mxu0 0.0
      %1177 = vmatprep.subr.mxu0 0.0
      %1178 = vmatpush1.msra.mxu0 0.0
      %1179 = vmatprep.subr.mxu0 0.0
      %1180 = vmatpush1.msra.mxu0 0.0
      %1181 = vmatprep.subr.mxu0 0.0
      %1182 = vmatpush1.msra.mxu0 0.0
      %1183 = vmatprep.subr.mxu0 0.0
      %1184 = vmatpush1.msra.mxu0 0.0
      %1185 = vmatprep.subr.mxu0 0.0
      %1186 = vmatpush1.msra.mxu0 0.0
      %1187 = vmatprep.subr.mxu0 0.0
      %1188 = vmatpush1.msra.mxu0 0.0
      %1189 = vmatprep.subr.mxu0 0.0
      %1190 = vmatpush1.msra.mxu0 0.0
      %1191 = vmatprep.subr.mxu0 0.0
      %1192 = vmatpush1.msra.mxu0 0.0
      %1193 = vmatprep.mubr.f32.mxu0 0.0
      %1194 = vmatmul.mubr.f32.gmra.mrb[0].mxu0 %v1121
      %v1195 = vpop.f32.mrb[0].mxu0
      %v1196 = vadd.f32 0.0, %v1195
      %v1197 = vpop.f32.mrb[0].mxu0
      %v1198 = vadd.f32 0.0, %v1197
      %1199 = vdwg.mxu0
      %1200 = vmatprep.subr.mxu0 %v537
      %1201 = vmatpush1.msra.mxu0 %v536
      %1202 = vmatprep.subr.mxu0 %v541
      %1203 = vmatpush1.msra.mxu0 %v540
      %1204 = vmatprep.subr.mxu0 %v545
      %1205 = vmatpush1.msra.mxu0 %v544
      %1206 = vmatprep.subr.mxu0 %v549
      %1207 = vmatpush1.msra.mxu0 %v548
      %1208 = vmatprep.subr.mxu0 %v553
      %1209 = vmatpush1.msra.mxu0 %v552
      %1210 = vmatprep.subr.mxu0 %v557
      %1211 = vmatpush1.msra.mxu0 %v556
      %1212 = vmatprep.subr.mxu0 %v561
      %1213 = vmatpush1.msra.mxu0 %v560
      %1214 = vmatprep.subr.mxu0 %v565
      %1215 = vmatpush1.msra.mxu0 %v564
      %1216 = vmatprep.subr.mxu0 %v569
      %1217 = vmatpush1.msra.mxu0 %v568
      %1218 = vmatprep.subr.mxu0 %v573
      %1219 = vmatpush1.msra.mxu0 %v572
      %1220 = vmatprep.subr.mxu0 %v577
      %1221 = vmatpush1.msra.mxu0 %v576
      %1222 = vmatprep.subr.mxu0 %v581
      %1223 = vmatpush1.msra.mxu0 %v580
      %1224 = vmatprep.subr.mxu0 %v585
      %1225 = vmatpush1.msra.mxu0 %v584
      %1226 = vmatprep.subr.mxu0 %v589
      %1227 = vmatpush1.msra.mxu0 %v588
      %1228 = vmatprep.subr.mxu0 %v593
      %1229 = vmatpush1.msra.mxu0 %v592
      %1230 = vmatprep.subr.mxu0 %v597
      %1231 = vmatpush1.msra.mxu0 %v596
      %1232 = vmatprep.subr.mxu0 0.0
      %1233 = vmatpush1.msra.mxu0 0.0
      %1234 = vmatprep.subr.mxu0 0.0
      %1235 = vmatpush1.msra.mxu0 0.0
      %1236 = vmatprep.subr.mxu0 0.0
      %1237 = vmatpush1.msra.mxu0 0.0
      %1238 = vmatprep.subr.mxu0 0.0
      %1239 = vmatpush1.msra.mxu0 0.0
      %1240 = vmatprep.subr.mxu0 0.0
      %1241 = vmatpush1.msra.mxu0 0.0
      %1242 = vmatprep.subr.mxu0 0.0
      %1243 = vmatpush1.msra.mxu0 0.0
      %1244 = vmatprep.subr.mxu0 0.0
      %1245 = vmatpush1.msra.mxu0 0.0
      %1246 = vmatprep.subr.mxu0 0.0
      %1247 = vmatpush1.msra.mxu0 0.0
      %1248 = vmatprep.subr.mxu0 0.0
      %1249 = vmatpush1.msra.mxu0 0.0
      %1250 = vmatprep.subr.mxu0 0.0
      %1251 = vmatpush1.msra.mxu0 0.0
      %1252 = vmatprep.subr.mxu0 0.0
      %1253 = vmatpush1.msra.mxu0 0.0
      %1254 = vmatprep.subr.mxu0 0.0
      %1255 = vmatpush1.msra.mxu0 0.0
      %1256 = vmatprep.subr.mxu0 0.0
      %1257 = vmatpush1.msra.mxu0 0.0
      %1258 = vmatprep.subr.mxu0 0.0
      %1259 = vmatpush1.msra.mxu0 0.0
      %1260 = vmatprep.subr.mxu0 0.0
      %1261 = vmatpush1.msra.mxu0 0.0
      %1262 = vmatprep.subr.mxu0 0.0
      %1263 = vmatpush1.msra.mxu0 0.0
      %1264 = vmatprep.mubr.f32.mxu0 0.0
      %1265 = vmatmul.mubr.f32.gmra.mrb[0].mxu0 %v1121
      %v1266 = vpop.f32.mrb[0].mxu0
      %v1267 = vadd.f32 0.0, %v1266
      %v1268 = vpop.f32.mrb[0].mxu0
      %v1269 = vadd.f32 0.0, %v1268
      %1270 = vdwg.mxu0
      %v1271 = vadd.f32 %v1125, %v1196
      %v1272 = vadd.f32 %v1126, %v1198
      %v1273 = vadd.f32 %v1127, %v1267
      %v1274 = vadd.f32 %v1128, %v1269
      %v1275 = vxor.u32 %v1271, 2147483648
      %v1276 = vmul.f32 %v1275, 1.442695
      %v1277 = vpow.pop %v1276
      %v1278 = vadd.f32 %v1277, 1.0
      %v1279 = vrcp.pop %v1278
      %v1280 = vmul.f32 1.0, %v1279
      %v1281 = vxor.u32 %v1272, 2147483648
      %v1282 = vmul.f32 %v1281, 1.442695
      %v1283 = vpow.pop %v1282
      %v1284 = vadd.f32 %v1283, 1.0
      %v1285 = vrcp.pop %v1284
      %v1286 = vmul.f32 1.0, %v1285
      %v1287 = vtanh.pop %v1273
      %v1288 = vxor.u32 %v1274, 2147483648
      %v1289 = vmul.f32 %v1288, 1.442695
      %v1290 = vpow.pop %v1289
      %v1291 = vadd.f32 %v1290, 1.0
      %v1292 = vrcp.pop %v1291
      %v1293 = vmul.f32 1.0, %v1292
      %v1294 = vmul.f32 %v1286, %v1119
      %v1295 = vmul.f32 %v1280, %v1287
      %v1296 = vadd.f32 %v1294, %v1295
      %v1297 = vtanh.pop %v1296
      %v1298 = vmul.f32 %v1293, %v1297
      %1299 = vst [vmem:[#allocation2] sm:$0xff] %v1298
      %1300 = vst [vmem:[#allocation3] sm:$0xff] %v1296
      %p1301 = scmp.eq.s32.totalorder %s22, 1
      // Predicated region
      $region49: #{lstm_forward.1} parent=43 // pred_check
        %p1302 = pneg %p1301
      $region50: #{lstm_forward.1} parent=43 // pred_check_branch
        %1304 = sbr.rel (%p1302) target = $region52
      $region51: #{lstm_forward.1} parent=43 // pred_region
        %v1305 = vld [vmem:[%s4] sm:$0xff]
        %v1306 = vld [vmem:[%s4 + $0x8] sm:$0xff]
        %v1307 = vld [vmem:[%s4 + $0x10] sm:$0xff]
        %v1308 = vld [vmem:[%s4 + $0x18] sm:$0xff]
        %v1309 = vld [vmem:[%s4 + $0x20] sm:$0xff]
        %v1310 = vld [vmem:[%s4 + $0x28] sm:$0xff]
        %v1311 = vld [vmem:[%s4 + $0x30] sm:$0xff]
        %v1312 = vld [vmem:[%s4 + $0x38] sm:$0xff]
        %v1313 = vld [vmem:[%s4 + $0x40] sm:$0xff]
        %v1314 = vld [vmem:[%s4 + $0x48] sm:$0xff]
        %v1315 = vld [vmem:[%s4 + $0x50] sm:$0xff]
        %v1316 = vld [vmem:[%s4 + $0x58] sm:$0xff]
        %v1317 = vld [vmem:[%s4 + $0x60] sm:$0xff]
        %v1318 = vld [vmem:[%s4 + $0x68] sm:$0xff]
        %v1319 = vld [vmem:[%s4 + $0x70] sm:$0xff]
        %v1320 = vld [vmem:[%s4 + $0x78] sm:$0xff]
        %v1321 = vld [vmem:[%s5] sm:$0x1]
        %v1323 = vlaneseq
        %v1324 = vshrl.u32 %v1323, 7
        %v1325 = vsub.s32 0, %v1324
        %v1326 = vrot.slane %v1321, %v1325
        %1328 = vmatprep.subr.mxu0 0.0
        %1329 = vmatpush1.msra.mxu0 %v1305
        %1330 = vmatprep.subr.mxu0 0.0
        %1331 = vmatpush1.msra.mxu0 %v1306
        %1332 = vmatprep.subr.mxu0 0.0
        %1333 = vmatpush1.msra.mxu0 %v1307
        %1334 = vmatprep.subr.mxu0 0.0
        %1335 = vmatpush1.msra.mxu0 %v1308
        %1336 = vmatprep.subr.mxu0 0.0
        %1337 = vmatpush1.msra.mxu0 %v1309
        %1338 = vmatprep.subr.mxu0 0.0
        %1339 = vmatpush1.msra.mxu0 %v1310
        %1340 = vmatprep.subr.mxu0 0.0
        %1341 = vmatpush1.msra.mxu0 %v1311
        %1342 = vmatprep.subr.mxu0 0.0
        %1343 = vmatpush1.msra.mxu0 %v1312
        %1344 = vmatprep.subr.mxu0 0.0
        %1345 = vmatpush1.msra.mxu0 %v1313
        %1346 = vmatprep.subr.mxu0 0.0
        %1347 = vmatpush1.msra.mxu0 %v1314
        %1348 = vmatprep.subr.mxu0 0.0
        %1349 = vmatpush1.msra.mxu0 %v1315
        %1350 = vmatprep.subr.mxu0 0.0
        %1351 = vmatpush1.msra.mxu0 %v1316
        %1352 = vmatprep.subr.mxu0 0.0
        %1353 = vmatpush1.msra.mxu0 %v1317
        %1354 = vmatprep.subr.mxu0 0.0
        %1355 = vmatpush1.msra.mxu0 %v1318
        %1356 = vmatprep.subr.mxu0 0.0
        %1357 = vmatpush1.msra.mxu0 %v1319
        %1358 = vmatprep.subr.mxu0 0.0
        %1359 = vmatpush1.msra.mxu0 %v1320
        %1360 = vmatprep.subr.mxu0 0.0
        %1361 = vmatpush1.msra.mxu0 0.0
        %1362 = vmatprep.subr.mxu0 0.0
        %1363 = vmatpush1.msra.mxu0 0.0
        %1364 = vmatprep.subr.mxu0 0.0
        %1365 = vmatpush1.msra.mxu0 0.0
        %1366 = vmatprep.subr.mxu0 0.0
        %1367 = vmatpush1.msra.mxu0 0.0
        %1368 = vmatprep.subr.mxu0 0.0
        %1369 = vmatpush1.msra.mxu0 0.0
        %1370 = vmatprep.subr.mxu0 0.0
        %1371 = vmatpush1.msra.mxu0 0.0
        %1372 = vmatprep.subr.mxu0 0.0
        %1373 = vmatpush1.msra.mxu0 0.0
        %1374 = vmatprep.subr.mxu0 0.0
        %1375 = vmatpush1.msra.mxu0 0.0
        %1376 = vmatprep.subr.mxu0 0.0
        %1377 = vmatpush1.msra.mxu0 0.0
        %1378 = vmatprep.subr.mxu0 0.0
        %1379 = vmatpush1.msra.mxu0 0.0
        %1380 = vmatprep.subr.mxu0 0.0
        %1381 = vmatpush1.msra.mxu0 0.0
        %1382 = vmatprep.subr.mxu0 0.0
        %1383 = vmatpush1.msra.mxu0 0.0
        %1384 = vmatprep.subr.mxu0 0.0
        %1385 = vmatpush1.msra.mxu0 0.0
        %1386 = vmatprep.subr.mxu0 0.0
        %1387 = vmatpush1.msra.mxu0 0.0
        %1388 = vmatprep.subr.mxu0 0.0
        %1389 = vmatpush1.msra.mxu0 0.0
        %1390 = vmatprep.subr.mxu0 0.0
        %1391 = vmatpush1.msra.mxu0 0.0
        %1392 = vmatprep.mubr.f32.mxu0 0.0
        %1393 = vmatmul.mubr.f32.gmra.mrb[0].mxu0 %v1298
        %v1394 = vpop.f32.mrb[0].mxu0
        %v1395 = vadd.f32 %v1326, %v1394
        %v1396 = vpop.f32.mrb[0].mxu0
        %1397 = vdwg.mxu0
        %1398 = vst [vmem:[%s277] sm:$0xff] %v1395
      $region52: #{lstm_forward.1} parent=43 // pred_fallthru
        _
      %p1399 = scmp.lt.s32.totalorder %s21, 0
      %s1400 = scalar_select %p1399, %s21, 0
      %s1401 = smul.addr %s1400, 8
      %s1402 = scalar_lea.vmem %s6, %s1401
      // Predicated region
      $region53: #{lstm_forward.1} parent=43 // pred_check
        %p1403 = pneg %p180
      $region54: #{lstm_forward.1} parent=43 // pred_check_branch
        %1405 = sbr.rel (%p1403) target = $region56
      $region55: #{lstm_forward.1} parent=43 // pred_region
        _
      $region56: #{lstm_forward.1} parent=43 // pred_fallthru
        _
      // Predicated region
      $region57: #{lstm_forward.1} parent=43 // pred_check
        %p1406 = pneg %p180
      $region58: #{lstm_forward.1} parent=43 // pred_check_branch
        %1408 = sbr.rel (%p1406) target = $region60
      $region59: #{lstm_forward.1} parent=43 // pred_region
        %p1409 = scmp.lt.s32.totalorder %s21, 0
        %s1410 = scalar_select %p1409, %s21, 0
        %s1411 = smul.addr %s1410, 8
        %s1412 = scalar_lea.vmem %s6, %s1411
      $region60: #{lstm_forward.1} parent=43 // pred_fallthru
        _
    $region44: #{lstm_forward.1} parent=5 // pred_fallthru
      _
    %p1413 = scmp.le.s32.totalorder 2, %s12
    // Predicated region
    $region61: #{lstm_forward.1} parent=5 // pred_check
      %p1414 = pneg %p1413
    $region62: #{lstm_forward.1} parent=5 // pred_check_branch
      %1416 = sbr.rel (%p1414) target = $region64
    $region63: #{lstm_forward.1} parent=5 // pred_region
      %s1417 = ssub.s32 %s12, 2
    $region64: #{lstm_forward.1} parent=5 // pred_fallthru
      _
  $region6: #{lstm_forward.1} parent=0 // loop_footer
    %s16 = sadd.s32 1, %s12
  $region7: #{lstm_forward.1} parent=0 // loop_footer_branch
    %11 = sbr.rel target = $region3
  $region8: #{lstm_forward.1} parent=0 // loop_exit
    _

</llo_original>
